<compile_context>
chip_gen: v7x
topology: tpu7x:2x2x1
jax: 0.10.0
libtpu: 0.0.40
codegen_flags: <defaults>
</compile_context>

<pallas_src>
import math

import jax
import jax.numpy as jnp
from jax.experimental import pallas as pl
from jax.experimental.pallas import tpu as pltpu


def _round_up(x: int, m: int) -> int:
    return ((x + m - 1) // m) * m


def _mlp_kernel(x_ref, w1_ref, b1_ref, w2_ref, b2_ref, o_ref):
    # Hidden layer: bf16 matmul on MXU with f32 accumulation.
    h = jnp.dot(x_ref[...], w1_ref[...], preferred_element_type=jnp.float32)
    # Bias + ReLU in f32 on the VPU (v5e has no bf16 VPU path).
    h = jnp.maximum(h + b1_ref[...], 0.0)          # (TILE_B, H) + (1, H)
    # Output layer: cast activations back to the weight dtype for the bf16
    # MXU path, accumulate in f32.
    y = jnp.dot(h.astype(w2_ref.dtype), w2_ref[...],
                preferred_element_type=jnp.float32)
    o_ref[...] = (y + b2_ref[...]).astype(o_ref.dtype)


def net_forward(x, w1, b1, w2, b2, *, tile_b: int = 256,
                compute_dtype=jnp.bfloat16):
    """x: (B, n_input); w1: (n_input, n_hidden); b1: (1, n_hidden);
    w2: (n_hidden, n_output); b2: (1, n_output). Returns (B, n_output) f32."""
    batch, n_in = x.shape
    n_hidden = w1.shape[1]
    n_out = w2.shape[1]

    # Lane-dense output: pad the class dimension up to a multiple of 128 so
    # output stores are unmasked full-vreg stores; slice back afterwards.
    n_out_p = _round_up(max(n_out, 128), 128)

    # Batch tiling: keep tile_b a multiple of 8 and no larger than needed.
    tile_b = max(8, min(tile_b, _round_up(batch, 8)))
    batch_p = _round_up(batch, tile_b)

    # Cast the streamed tensor + weights to bf16 (halves HBM traffic, hits the
    # native bf16 MXU path); biases stay f32 for the f32 bias-add/ReLU.
    xc = x.astype(compute_dtype)
    if batch_p != batch:
        xc = jnp.pad(xc, ((0, batch_p - batch), (0, 0)))
    w1c = w1.astype(compute_dtype)
    w2c = jnp.pad(w2, ((0, 0), (0, n_out_p - n_out))).astype(compute_dtype)
    b1c = b1.astype(jnp.float32)
    b2c = jnp.pad(b2, ((0, 0), (0, n_out_p - n_out))).astype(jnp.float32)

    grid = (batch_p // tile_b,)

    out = pl.pallas_call(
        _mlp_kernel,
        out_shape=jax.ShapeDtypeStruct((batch_p, n_out_p), jnp.float32),
        grid=grid,
        in_specs=[
            # Streamed per-step: one batch tile of x.
            pl.BlockSpec((tile_b, n_in), lambda i: (i, 0)),
            # Loop-invariant parameters: resident full blocks in VMEM.
            pl.BlockSpec((n_in, n_hidden), lambda i: (0, 0)),
            pl.BlockSpec((1, n_hidden), lambda i: (0, 0)),
            pl.BlockSpec((n_hidden, n_out_p), lambda i: (0, 0)),
            pl.BlockSpec((1, n_out_p), lambda i: (0, 0)),
        ],
        out_specs=pl.BlockSpec((tile_b, n_out_p), lambda i: (i, 0)),
        compiler_params=pltpu.CompilerParams(
            dimension_semantics=("parallel",)),
    )(xc, w1c, b1c, w2c, b2c)

    return out[:batch, :n_out]


def init_linear_params(key, fan_in, fan_out, dtype=jnp.float32):
    """Deterministic init mimicking nn.Linear default: U(-1/sqrt(fan_in), +...)."""
    k_w, k_b = jax.random.split(key)
    bound = 1.0 / math.sqrt(fan_in)
    # Stored as (in, out) — transpose of PyTorch's (out, in) layout.
    w = jax.random.uniform(k_w, (fan_in, fan_out), dtype, minval=-bound, maxval=bound)
    b = jax.random.uniform(k_b, (1, fan_out), dtype, minval=-bound, maxval=bound)
    return w, b


if __name__ == "__main__":
    # MNIST-like shapes; batch large enough to exercise the batch grid
    # (2 grid steps at TILE_B=256) but still small/fast.
    batch = 512
    n_input = 784
    n_hidden = 128
    n_output = 10

    key = jax.random.PRNGKey(0)
    k_x, k_l1, k_l2 = jax.random.split(key, 3)

    x = jax.random.normal(k_x, (batch, n_input), jnp.float32)
    w1, b1 = init_linear_params(k_l1, n_input, n_hidden)
    w2, b2 = init_linear_params(k_l2, n_hidden, n_output)

    out = net_forward(x, w1, b1, w2, b2, tile_b=256)
    out = jax.block_until_ready(out)

    # Reference in plain JAX mirroring the kernel's bf16-in / f32-accumulate
    # numerics (inputs cast to bf16, accumulation and elementwise in f32).
    xb = x.astype(jnp.bfloat16).astype(jnp.float32)
    w1b = w1.astype(jnp.bfloat16).astype(jnp.float32)
    w2b = w2.astype(jnp.bfloat16).astype(jnp.float32)
    h = jnp.maximum(xb @ w1b + b1, 0.0)
    hb = h.astype(jnp.bfloat16).astype(jnp.float32)
    ref = hb @ w2b + b2

    assert out.shape == (batch, n_output)
    assert jnp.allclose(out, ref, atol=2e-2, rtol=2e-2), "mismatch vs reference"

    print("KERNEL_OK")
</pallas_src>

<mosaic_0001>
module attributes {stable_mosaic.version = 11 : i64} {
  func.func @_mlp_kernel(%arg0: i32, %arg1: memref<256x784xbf16, #tpu.memory_space<vmem>>, %arg2: memref<784x128xbf16, #tpu.memory_space<vmem>>, %arg3: memref<1x128xf32, #tpu.memory_space<vmem>>, %arg4: memref<128x128xbf16, #tpu.memory_space<vmem>>, %arg5: memref<1x128xf32, #tpu.memory_space<vmem>>, %arg6: memref<256x128xf32, #tpu.memory_space<vmem>>) attributes {dimension_semantics = [#tpu.dimension_semantics<parallel>], iteration_bounds = array<i64: 2>, scalar_prefetch = 0 : i64, scratch_operands = 0 : i64, tpu.core_type = #tpu.core_type<tc>, window_params = [{transform_indices = @transform_0, window_bounds = array<i64: 256, 784>}, {pipeline_mode = #tpu.pipeline_mode<synchronous>, transform_indices = @transform_1, window_bounds = array<i64: 784, 128>}, {pipeline_mode = #tpu.pipeline_mode<synchronous>, transform_indices = @transform_2, window_bounds = array<i64: 1, 128>}, {pipeline_mode = #tpu.pipeline_mode<synchronous>, transform_indices = @transform_3, window_bounds = array<i64: 128, 128>}, {pipeline_mode = #tpu.pipeline_mode<synchronous>, transform_indices = @transform_4, window_bounds = array<i64: 1, 128>}, {transform_indices = @transform_5, window_bounds = array<i64: 256, 128>}]} {
    %c0 = arith.constant 0 : index
    %c0_0 = arith.constant 0 : index
    %0 = vector.load %arg1[%c0, %c0_0] : memref<256x784xbf16, #tpu.memory_space<vmem>>, vector<256x784xbf16>
    %c0_1 = arith.constant 0 : index
    %c0_2 = arith.constant 0 : index
    %1 = vector.load %arg2[%c0_1, %c0_2] : memref<784x128xbf16, #tpu.memory_space<vmem>>, vector<784x128xbf16>
    %cst = arith.constant dense<0.000000e+00> : vector<256x128xf32>
    %2 = tpu.matmul %0, %1, %cst {dimension_numbers = #tpu.dot_dimension_numbers<[1], [0], [0], [1], [0, 0, 1, 1], [], []>} : vector<256x784xbf16>, vector<784x128xbf16>, vector<256x128xf32> -> vector<256x128xf32>
    %c0_3 = arith.constant 0 : index
    %c0_4 = arith.constant 0 : index
    %3 = vector.load %arg3[%c0_3, %c0_4] : memref<1x128xf32, #tpu.memory_space<vmem>>, vector<1x128xf32>
    %4 = vector.broadcast %3 : vector<1x128xf32> to vector<256x128xf32>
    %5 = arith.addf %2, %4 : vector<256x128xf32>
    %cst_5 = arith.constant 0.000000e+00 : f32
    %6 = vector.broadcast %cst_5 : f32 to vector<256x128xf32>
    %7 = arith.maximumf %5, %6 : vector<256x128xf32>
    %8 = arith.truncf %7 : vector<256x128xf32> to vector<256x128xbf16>
    %c0_6 = arith.constant 0 : index
    %c0_7 = arith.constant 0 : index
    %9 = vector.load %arg4[%c0_6, %c0_7] : memref<128x128xbf16, #tpu.memory_space<vmem>>, vector<128x128xbf16>
    %cst_8 = arith.constant dense<0.000000e+00> : vector<256x128xf32>
    %10 = tpu.matmul %8, %9, %cst_8 {dimension_numbers = #tpu.dot_dimension_numbers<[1], [0], [0], [1], [0, 0, 1, 1], [], []>} : vector<256x128xbf16>, vector<128x128xbf16>, vector<256x128xf32> -> vector<256x128xf32>
    %c0_9 = arith.constant 0 : index
    %c0_10 = arith.constant 0 : index
    %11 = vector.load %arg5[%c0_9, %c0_10] : memref<1x128xf32, #tpu.memory_space<vmem>>, vector<1x128xf32>
    %12 = vector.broadcast %11 : vector<1x128xf32> to vector<256x128xf32>
    %13 = arith.addf %10, %12 : vector<256x128xf32>
    %c0_11 = arith.constant 0 : index
    %c0_12 = arith.constant 0 : index
    %14 = vector.load %arg6[%c0_11, %c0_12] : memref<256x128xf32, #tpu.memory_space<vmem>>, vector<256x128xf32>
    tpu.vector_store %arg6[%c0_11, %c0_12], %13 {strides = array<i32>} : memref<256x128xf32, #tpu.memory_space<vmem>>, vector<256x128xf32>,
    return
  }
  func.func @transform_0(%arg0: i32) -> (i32, i32) {
    %c0_i32 = arith.constant 0 : i32
    %c0_i32_0 = arith.constant 0 : i32
    return %arg0, %c0_i32 : i32, i32
  }
  func.func @transform_1(%arg0: i32) -> (i32, i32) {
    %c0_i32 = arith.constant 0 : i32
    %c0_i32_0 = arith.constant 0 : i32
    %c0_i32_1 = arith.constant 0 : i32
    return %c0_i32, %c0_i32_0 : i32, i32
  }
  func.func @transform_2(%arg0: i32) -> (i32, i32) {
    %c0_i32 = arith.constant 0 : i32
    %c0_i32_0 = arith.constant 0 : i32
    %c0_i32_1 = arith.constant 0 : i32
    return %c0_i32, %c0_i32_0 : i32, i32
  }
  func.func @transform_3(%arg0: i32) -> (i32, i32) {
    %c0_i32 = arith.constant 0 : i32
    %c0_i32_0 = arith.constant 0 : i32
    %c0_i32_1 = arith.constant 0 : i32
    return %c0_i32, %c0_i32_0 : i32, i32
  }
  func.func @transform_4(%arg0: i32) -> (i32, i32) {
    %c0_i32 = arith.constant 0 : i32
    %c0_i32_0 = arith.constant 0 : i32
    %c0_i32_1 = arith.constant 0 : i32
    return %c0_i32, %c0_i32_0 : i32, i32
  }
  func.func @transform_5(%arg0: i32) -> (i32, i32) {
    %c0_i32 = arith.constant 0 : i32
    %c0_i32_0 = arith.constant 0 : i32
    return %arg0, %c0_i32 : i32, i32
  }
}

</mosaic_0001>

<llo_original>
// kernel: tpu_custom_call.1
$region0: #{tpu_custom_call.1}
  #allocation0 [shape = 'u32[]', space=smem, size = 0x4, offset = 0x4, fixed_abs, tag = 'smem constant byte address 0x4 - core index']
  #allocation1 [shape = 'u32[144,128]{1,0:T(1,128)}', space=vmem, size = 0x12000, scoped, tag = 'internal scratch']
  %s0 = inlined_call_operand.vmem [shape: bf16[512,784], index: 0, kind: input, shape index: {}]
  %s1 = inlined_call_operand.vmem [shape: bf16[784,128], index: 1, kind: input, shape index: {}]
  %s2 = inlined_call_operand.vmem [shape: f32[1,128], index: 2, kind: input, shape index: {}]
  %s3 = inlined_call_operand.vmem [shape: bf16[128,128], index: 3, kind: input, shape index: {}]
  %s4 = inlined_call_operand.vmem [shape: f32[1,128], index: 4, kind: input, shape index: {}]
  %s5 = inlined_call_operand.hbm [shape: f32[512,128], index: 5, kind: output, shape index: {}]
  %s6 = sld [smem:[#allocation0]]
  $region53: #{tpu_custom_call.1} parent=0
    _
  %s8 = ssub.s32 1, %s6
  %s9 = scalar_select 0, %s8, %s6
  $region1: #{tpu_custom_call.1} parent=0
    #allocation2 [shape = 'u8[262144]{0}', space=vmem, size = 0x40000, scoped, tag = 'output window, operand 0']
    #allocation3 [shape = 's32[2]{0}', space=sflag, size = 0x8, scoped, tag = 'scoped memory for tpu_custom_call.1']
    %10 = vsyncpa [#allocation3], 0
    %s11 = scalar_lea.sflag [#allocation3], 1
    %12 = vsyncpa %s11, 0
    loop: start=0, step=1, limit=4
    $region2: #{tpu_custom_call.1} parent=1 // loop_pre_header
      _
    $region3: #{tpu_custom_call.1} parent=1 // loop_header
      %s14 = sphi 0, %s18
      %p15 = scmp.ge.s32.totalorder %s14, 4
      %s24 = sphi 0, %s26
      %s27 = sphi 0, %s24
      %s28 = sphi 0, %s27
      %s44 = sphi 0, %s28
      %s48 = sphi 0, %s48
      %s50 = sphi 0, %s48
      %s51 = sphi 0, %s50
      %s65 = sphi 0, %s51
      %s69 = sphi 0, %s69
      %s71 = sphi 0, %s69
      %s72 = sphi 0, %s71
      %s86 = sphi 0, %s72
      %s90 = sphi 0, %s90
      %s92 = sphi 0, %s90
      %s93 = sphi 0, %s92
      %s107 = sphi 0, %s93
      %s111 = sphi 0, %s111
      %s113 = sphi 0, %s111
      %s114 = sphi 0, %s113
      %s128 = sphi 0, %s114
      %s134 = sphi 0, %s136
      %s137 = sphi 0, %s134
      %s138 = sphi 0, %s137
      %s154 = sphi 0, %s138
    $region4: #{tpu_custom_call.1} parent=1 // loop_header_branch
      %17 = sbr.rel (%p15) target = $region8
    $region5: #{tpu_custom_call.1} parent=1 // loop_body
      %s19 = ssub.s32 %s14, 1
      %s20 = ssub.s32 %s14, 2
      %s21 = sadd.s32 %s14, 1
      %s22 = ssub.s32 %s14, %s21
      %p23 = scmp.eq.s32.totalorder %s22, 0
      %s25 = sadd.s32 %s24, 1
      %s26 = scalar_select %p23, %s24, %s25
      %p29 = pneg %p23
      %p30 = scmp.eq.s32.totalorder %s14, 1
      %p31 = por %p29, %p30
      %p32 = scmp.ne.s32.totalorder %s24, %s27
      %p33 = scmp.eq.s32.totalorder %s14, 0
      %p34 = por %p32, %p33
      %p35 = scmp.ne.s32.totalorder %s24, %s27
      %p36 = scmp.eq.s32.totalorder %s19, 1
      %p37 = por %p35, %p36
      %p38 = scmp.ne.s32.totalorder %s27, %s28
      %p39 = scmp.eq.s32.totalorder %s19, 0
      %p40 = por %p38, %p39
      %p41 = scmp.ne.s32.totalorder %s27, %s28
      %p42 = scmp.eq.s32.totalorder %s20, 1
      %p43 = por %p41, %p42
      %p45 = scmp.ne.s32.totalorder %s28, %s44
      %p46 = scmp.eq.s32.totalorder %s20, 0
      %p47 = por %p45, %p46
      %s49 = sadd.s32 %s48, 1
      %p52 = scmp.eq.s32.totalorder %s14, 1
      %p53 = scmp.ne.s32.totalorder %s48, %s50
      %p54 = scmp.eq.s32.totalorder %s14, 0
      %p55 = por %p53, %p54
      %p56 = scmp.ne.s32.totalorder %s48, %s50
      %p57 = scmp.eq.s32.totalorder %s19, 1
      %p58 = por %p56, %p57
      %p59 = scmp.ne.s32.totalorder %s50, %s51
      %p60 = scmp.eq.s32.totalorder %s19, 0
      %p61 = por %p59, %p60
      %p62 = scmp.ne.s32.totalorder %s50, %s51
      %p63 = scmp.eq.s32.totalorder %s20, 1
      %p64 = por %p62, %p63
      %p66 = scmp.ne.s32.totalorder %s51, %s65
      %p67 = scmp.eq.s32.totalorder %s20, 0
      %p68 = por %p66, %p67
      %s70 = sadd.s32 %s69, 1
      %p73 = scmp.eq.s32.totalorder %s14, 1
      %p74 = scmp.ne.s32.totalorder %s69, %s71
      %p75 = scmp.eq.s32.totalorder %s14, 0
      %p76 = por %p74, %p75
      %p77 = scmp.ne.s32.totalorder %s69, %s71
      %p78 = scmp.eq.s32.totalorder %s19, 1
      %p79 = por %p77, %p78
      %p80 = scmp.ne.s32.totalorder %s71, %s72
      %p81 = scmp.eq.s32.totalorder %s19, 0
      %p82 = por %p80, %p81
      %p83 = scmp.ne.s32.totalorder %s71, %s72
      %p84 = scmp.eq.s32.totalorder %s20, 1
      %p85 = por %p83, %p84
      %p87 = scmp.ne.s32.totalorder %s72, %s86
      %p88 = scmp.eq.s32.totalorder %s20, 0
      %p89 = por %p87, %p88
      %s91 = sadd.s32 %s90, 1
      %p94 = scmp.eq.s32.totalorder %s14, 1
      %p95 = scmp.ne.s32.totalorder %s90, %s92
      %p96 = scmp.eq.s32.totalorder %s14, 0
      %p97 = por %p95, %p96
      %p98 = scmp.ne.s32.totalorder %s90, %s92
      %p99 = scmp.eq.s32.totalorder %s19, 1
      %p100 = por %p98, %p99
      %p101 = scmp.ne.s32.totalorder %s92, %s93
      %p102 = scmp.eq.s32.totalorder %s19, 0
      %p103 = por %p101, %p102
      %p104 = scmp.ne.s32.totalorder %s92, %s93
      %p105 = scmp.eq.s32.totalorder %s20, 1
      %p106 = por %p104, %p105
      %p108 = scmp.ne.s32.totalorder %s93, %s107
      %p109 = scmp.eq.s32.totalorder %s20, 0
      %p110 = por %p108, %p109
      %s112 = sadd.s32 %s111, 1
      %p115 = scmp.eq.s32.totalorder %s14, 1
      %p116 = scmp.ne.s32.totalorder %s111, %s113
      %p117 = scmp.eq.s32.totalorder %s14, 0
      %p118 = por %p116, %p117
      %p119 = scmp.ne.s32.totalorder %s111, %s113
      %p120 = scmp.eq.s32.totalorder %s19, 1
      %p121 = por %p119, %p120
      %p122 = scmp.ne.s32.totalorder %s113, %s114
      %p123 = scmp.eq.s32.totalorder %s19, 0
      %p124 = por %p122, %p123
      %p125 = scmp.ne.s32.totalorder %s113, %s114
      %p126 = scmp.eq.s32.totalorder %s20, 1
      %p127 = por %p125, %p126
      %p129 = scmp.ne.s32.totalorder %s114, %s128
      %p130 = scmp.eq.s32.totalorder %s20, 0
      %p131 = por %p129, %p130
      %s132 = ssub.s32 %s14, %s21
      %p133 = scmp.eq.s32.totalorder %s132, 0
      %s135 = sadd.s32 %s134, 1
      %s136 = scalar_select %p133, %s134, %s135
      %p139 = pneg %p133
      %p140 = scmp.eq.s32.totalorder %s14, 1
      %p141 = por %p139, %p140
      %p142 = scmp.ne.s32.totalorder %s134, %s137
      %p143 = scmp.eq.s32.totalorder %s14, 0
      %p144 = por %p142, %p143
      %p145 = scmp.ne.s32.totalorder %s134, %s137
      %p146 = scmp.eq.s32.totalorder %s19, 1
      %p147 = por %p145, %p146
      %p148 = scmp.ne.s32.totalorder %s137, %s138
      %p149 = scmp.eq.s32.totalorder %s19, 0
      %p150 = por %p148, %p149
      %p151 = scmp.ne.s32.totalorder %s137, %s138
      %p152 = scmp.eq.s32.totalorder %s20, 1
      %p153 = por %p151, %p152
      %p155 = scmp.ne.s32.totalorder %s138, %s154
      %p156 = scmp.eq.s32.totalorder %s20, 0
      %p157 = por %p155, %p156
      %p158 = scmp.le.s32.totalorder 1, %s14
      %p159 = scmp.lt.s32.totalorder %s14, 3
      %p160 = pnand %p158, %p159
      %p161 = pneg %p160
      // Predicated region
      $region9: #{tpu_custom_call.1} parent=5 // pred_check
        _
      $region10: #{tpu_custom_call.1} parent=5 // pred_check_branch
        %163 = sbr.rel (%p160) target = $region12
      $region11: #{tpu_custom_call.1} parent=5 // pred_region
        %s164 = ssub.s32 %s14, 1
        // Predicated region
        $region13: #{tpu_custom_call.1} parent=11 // pred_check
          %p165 = pneg %p61
        $region14: #{tpu_custom_call.1} parent=11 // pred_check_branch
          %167 = sbr.rel (%p165) target = $region16
        $region15: #{tpu_custom_call.1} parent=11 // pred_region
          _
        $region16: #{tpu_custom_call.1} parent=11 // pred_fallthru
          _
        // Predicated region
        $region17: #{tpu_custom_call.1} parent=11 // pred_check
          %p168 = pneg %p82
        $region18: #{tpu_custom_call.1} parent=11 // pred_check_branch
          %170 = sbr.rel (%p168) target = $region20
        $region19: #{tpu_custom_call.1} parent=11 // pred_region
          _
        $region20: #{tpu_custom_call.1} parent=11 // pred_fallthru
          _
        // Predicated region
        $region21: #{tpu_custom_call.1} parent=11 // pred_check
          %p171 = pneg %p103
        $region22: #{tpu_custom_call.1} parent=11 // pred_check_branch
          %173 = sbr.rel (%p171) target = $region24
        $region23: #{tpu_custom_call.1} parent=11 // pred_region
          _
        $region24: #{tpu_custom_call.1} parent=11 // pred_fallthru
          _
        // Predicated region
        $region25: #{tpu_custom_call.1} parent=11 // pred_check
          %p174 = pneg %p124
        $region26: #{tpu_custom_call.1} parent=11 // pred_check_branch
          %176 = sbr.rel (%p174) target = $region28
        $region27: #{tpu_custom_call.1} parent=11 // pred_region
          _
        $region28: #{tpu_custom_call.1} parent=11 // pred_fallthru
          _
      $region12: #{tpu_custom_call.1} parent=5 // pred_fallthru
        _
      %p177 = scmp.lt.s32.totalorder %s14, 2
      // Predicated region
      $region29: #{tpu_custom_call.1} parent=5 // pred_check
        %p178 = pneg %p177
      $region30: #{tpu_custom_call.1} parent=5 // pred_check_branch
        %180 = sbr.rel (%p178) target = $region32
      $region31: #{tpu_custom_call.1} parent=5 // pred_region
        // Predicated region
        $region33: #{tpu_custom_call.1} parent=31 // pred_check
          %p181 = pneg %p34
        $region34: #{tpu_custom_call.1} parent=31 // pred_check_branch
          %183 = sbr.rel (%p181) target = $region36
        $region35: #{tpu_custom_call.1} parent=31 // pred_region
          %s184 = smul.u32 32, %s14
          %p185 = scmp.lt.s32.totalorder %s184, 63
          %s186 = scalar_select %p185, %s184, 63
          %s187 = smul.addr %s186, 7
          %s188 = smul.addr %s187, 4
          %s189 = scalar_lea.vmem %s0, %s188
          %s190 = smul.u32 32, %s14
        $region36: #{tpu_custom_call.1} parent=31 // pred_fallthru
          _
      $region32: #{tpu_custom_call.1} parent=5 // pred_fallthru
        _
      %p191 = scmp.le.s32.totalorder 1, %s14
      %p192 = scmp.lt.s32.totalorder %s14, 3
      %p193 = pnand %p191, %p192
      %p194 = pneg %p193
      // Predicated region
      $region37: #{tpu_custom_call.1} parent=5 // pred_check
        _
      $region38: #{tpu_custom_call.1} parent=5 // pred_check_branch
        %196 = sbr.rel (%p193) target = $region40
      $region39: #{tpu_custom_call.1} parent=5 // pred_region
        %s197 = ssub.s32 %s14, 1
        %s198 = smul.u32 32, %s19
        %p199 = scmp.lt.s32.totalorder %s198, 63
        %s200 = scalar_select %p199, %s198, 63
        %s201 = smul.addr %s200, 7
        %s202 = smul.addr %s201, 4
        %s203 = scalar_lea.vmem %s0, %s202
        %p204 = pneg %p40
        %p205 = pneg %p37
        %p206 = pneg %p61
        %p207 = pneg %p58
        %p208 = pneg %p82
        %p209 = pneg %p79
        %p210 = pneg %p103
        %p211 = pneg %p100
        %p212 = pneg %p124
        %p213 = pneg %p121
        %p214 = pneg %p150
        %p215 = pneg %p147
        %s216 = sand.u32 %s137, 1
        %s217 = scalar_lea.sflag [#allocation3], %s216
        %s218 = sand.u32 %s137, 1
        %s219 = smul.addr %s218, 256
        %s220 = scalar_lea.vmem [#allocation2], %s219
        %s221 = smul.u32 32, %s19
        %p222 = scmp.lt.s32.totalorder %s221, 63
        %s223 = scalar_select %p222, %s221, 63
        %s224 = smul.addr %s223, 7
        %s225 = smul.addr %s224, 4
        %s226 = scalar_lea.vmem %s0, %s225
        %s227 = smul.u32 32, %s19
        %s228 = smul.u32 32, %s19
        %v230 = vld [vmem:[%s226] sm:$0xff]
        %v231 = vld [vmem:[%s226 + $0x8] sm:$0xff]
        %v232 = vld [vmem:[%s226 + $0x10] sm:$0xff]
        %v233 = vld [vmem:[%s226 + $0x18] sm:$0xf]
        %v234 = vld [vmem:[%s226 + $0x1c] sm:$0xff]
        %v235 = vld [vmem:[%s226 + $0x24] sm:$0xff]
        %v236 = vld [vmem:[%s226 + $0x2c] sm:$0xff]
        %v237 = vld [vmem:[%s226 + $0x34] sm:$0xf]
        %v238 = vld [vmem:[%s226 + $0x38] sm:$0xff]
        %v239 = vld [vmem:[%s226 + $0x40] sm:$0xff]
        %v240 = vld [vmem:[%s226 + $0x48] sm:$0xff]
        %v241 = vld [vmem:[%s226 + $0x50] sm:$0xf]
        %v242 = vld [vmem:[%s226 + $0x54] sm:$0xff]
        %v243 = vld [vmem:[%s226 + $0x5c] sm:$0xff]
        %v244 = vld [vmem:[%s226 + $0x64] sm:$0xff]
        %v245 = vld [vmem:[%s226 + $0x6c] sm:$0xf]
        %v246 = vld [vmem:[%s226 + $0x70] sm:$0xff]
        %v247 = vld [vmem:[%s226 + $0x78] sm:$0xff]
        %v248 = vld [vmem:[%s226 + $0x80] sm:$0xff]
        %v249 = vld [vmem:[%s226 + $0x88] sm:$0xf]
        %v250 = vld [vmem:[%s226 + $0x8c] sm:$0xff]
        %v251 = vld [vmem:[%s226 + $0x94] sm:$0xff]
        %v252 = vld [vmem:[%s226 + $0x9c] sm:$0xff]
        %v253 = vld [vmem:[%s226 + $0xa4] sm:$0xf]
        %v254 = vld [vmem:[%s226 + $0xa8] sm:$0xff]
        %v255 = vld [vmem:[%s226 + $0xb0] sm:$0xff]
        %v256 = vld [vmem:[%s226 + $0xb8] sm:$0xff]
        %v257 = vld [vmem:[%s226 + $0xc0] sm:$0xf]
        %v258 = vld [vmem:[%s226 + $0xc4] sm:$0xff]
        %v259 = vld [vmem:[%s226 + $0xcc] sm:$0xff]
        %v260 = vld [vmem:[%s226 + $0xd4] sm:$0xff]
        %v261 = vld [vmem:[%s226 + $0xdc] sm:$0xf]
        %v262 = vld [vmem:[%s226 + $0xe0] sm:$0xff]
        %v263 = vld [vmem:[%s226 + $0xe8] sm:$0xff]
        %v264 = vld [vmem:[%s226 + $0xf0] sm:$0xff]
        %v265 = vld [vmem:[%s226 + $0xf8] sm:$0xf]
        %v266 = vld [vmem:[%s226 + $0xfc] sm:$0xff]
        %v267 = vld [vmem:[%s226 + $0x104] sm:$0xff]
        %v268 = vld [vmem:[%s226 + $0x10c] sm:$0xff]
        %v269 = vld [vmem:[%s226 + $0x114] sm:$0xf]
        %v270 = vld [vmem:[%s226 + $0x118] sm:$0xff]
        %v271 = vld [vmem:[%s226 + $0x120] sm:$0xff]
        %v272 = vld [vmem:[%s226 + $0x128] sm:$0xff]
        %v273 = vld [vmem:[%s226 + $0x130] sm:$0xf]
        %v274 = vld [vmem:[%s226 + $0x134] sm:$0xff]
        %v275 = vld [vmem:[%s226 + $0x13c] sm:$0xff]
        %v276 = vld [vmem:[%s226 + $0x144] sm:$0xff]
        %v277 = vld [vmem:[%s226 + $0x14c] sm:$0xf]
        %v278 = vld [vmem:[%s226 + $0x150] sm:$0xff]
        %v279 = vld [vmem:[%s226 + $0x158] sm:$0xff]
        %v280 = vld [vmem:[%s226 + $0x160] sm:$0xff]
        %v281 = vld [vmem:[%s226 + $0x168] sm:$0xf]
        %v282 = vld [vmem:[%s226 + $0x16c] sm:$0xff]
        %v283 = vld [vmem:[%s226 + $0x174] sm:$0xff]
        %v284 = vld [vmem:[%s226 + $0x17c] sm:$0xff]
        %v285 = vld [vmem:[%s226 + $0x184] sm:$0xf]
        %v286 = vld [vmem:[%s226 + $0x188] sm:$0xff]
        %v287 = vld [vmem:[%s226 + $0x190] sm:$0xff]
        %v288 = vld [vmem:[%s226 + $0x198] sm:$0xff]
        %v289 = vld [vmem:[%s226 + $0x1a0] sm:$0xf]
        %v290 = vld [vmem:[%s226 + $0x1a4] sm:$0xff]
        %v291 = vld [vmem:[%s226 + $0x1ac] sm:$0xff]
        %v292 = vld [vmem:[%s226 + $0x1b4] sm:$0xff]
        %v293 = vld [vmem:[%s226 + $0x1bc] sm:$0xf]
        %v294 = vld [vmem:[%s226 + $0x1c0] sm:$0xff]
        %v295 = vld [vmem:[%s226 + $0x1c8] sm:$0xff]
        %v296 = vld [vmem:[%s226 + $0x1d0] sm:$0xff]
        %v297 = vld [vmem:[%s226 + $0x1d8] sm:$0xf]
        %v298 = vld [vmem:[%s226 + $0x1dc] sm:$0xff]
        %v299 = vld [vmem:[%s226 + $0x1e4] sm:$0xff]
        %v300 = vld [vmem:[%s226 + $0x1ec] sm:$0xff]
        %v301 = vld [vmem:[%s226 + $0x1f4] sm:$0xf]
        %v302 = vld [vmem:[%s226 + $0x1f8] sm:$0xff]
        %v303 = vld [vmem:[%s226 + $0x200] sm:$0xff]
        %v304 = vld [vmem:[%s226 + $0x208] sm:$0xff]
        %v305 = vld [vmem:[%s226 + $0x210] sm:$0xf]
        %v306 = vld [vmem:[%s226 + $0x214] sm:$0xff]
        %v307 = vld [vmem:[%s226 + $0x21c] sm:$0xff]
        %v308 = vld [vmem:[%s226 + $0x224] sm:$0xff]
        %v309 = vld [vmem:[%s226 + $0x22c] sm:$0xf]
        %v310 = vld [vmem:[%s226 + $0x230] sm:$0xff]
        %v311 = vld [vmem:[%s226 + $0x238] sm:$0xff]
        %v312 = vld [vmem:[%s226 + $0x240] sm:$0xff]
        %v313 = vld [vmem:[%s226 + $0x248] sm:$0xf]
        %v314 = vld [vmem:[%s226 + $0x24c] sm:$0xff]
        %v315 = vld [vmem:[%s226 + $0x254] sm:$0xff]
        %v316 = vld [vmem:[%s226 + $0x25c] sm:$0xff]
        %v317 = vld [vmem:[%s226 + $0x264] sm:$0xf]
        %v318 = vld [vmem:[%s226 + $0x268] sm:$0xff]
        %v319 = vld [vmem:[%s226 + $0x270] sm:$0xff]
        %v320 = vld [vmem:[%s226 + $0x278] sm:$0xff]
        %v321 = vld [vmem:[%s226 + $0x280] sm:$0xf]
        %v322 = vld [vmem:[%s226 + $0x284] sm:$0xff]
        %v323 = vld [vmem:[%s226 + $0x28c] sm:$0xff]
        %v324 = vld [vmem:[%s226 + $0x294] sm:$0xff]
        %v325 = vld [vmem:[%s226 + $0x29c] sm:$0xf]
        %v326 = vld [vmem:[%s226 + $0x2a0] sm:$0xff]
        %v327 = vld [vmem:[%s226 + $0x2a8] sm:$0xff]
        %v328 = vld [vmem:[%s226 + $0x2b0] sm:$0xff]
        %v329 = vld [vmem:[%s226 + $0x2b8] sm:$0xf]
        %v330 = vld [vmem:[%s226 + $0x2bc] sm:$0xff]
        %v331 = vld [vmem:[%s226 + $0x2c4] sm:$0xff]
        %v332 = vld [vmem:[%s226 + $0x2cc] sm:$0xff]
        %v333 = vld [vmem:[%s226 + $0x2d4] sm:$0xf]
        %v334 = vld [vmem:[%s226 + $0x2d8] sm:$0xff]
        %v335 = vld [vmem:[%s226 + $0x2e0] sm:$0xff]
        %v336 = vld [vmem:[%s226 + $0x2e8] sm:$0xff]
        %v337 = vld [vmem:[%s226 + $0x2f0] sm:$0xf]
        %v338 = vld [vmem:[%s226 + $0x2f4] sm:$0xff]
        %v339 = vld [vmem:[%s226 + $0x2fc] sm:$0xff]
        %v340 = vld [vmem:[%s226 + $0x304] sm:$0xff]
        %v341 = vld [vmem:[%s226 + $0x30c] sm:$0xf]
        %v342 = vld [vmem:[%s226 + $0x310] sm:$0xff]
        %v343 = vld [vmem:[%s226 + $0x318] sm:$0xff]
        %v344 = vld [vmem:[%s226 + $0x320] sm:$0xff]
        %v345 = vld [vmem:[%s226 + $0x328] sm:$0xf]
        %v346 = vld [vmem:[%s226 + $0x32c] sm:$0xff]
        %v347 = vld [vmem:[%s226 + $0x334] sm:$0xff]
        %v348 = vld [vmem:[%s226 + $0x33c] sm:$0xff]
        %v349 = vld [vmem:[%s226 + $0x344] sm:$0xf]
        %v350 = vld [vmem:[%s226 + $0x348] sm:$0xff]
        %v351 = vld [vmem:[%s226 + $0x350] sm:$0xff]
        %v352 = vld [vmem:[%s226 + $0x358] sm:$0xff]
        %v353 = vld [vmem:[%s226 + $0x360] sm:$0xf]
        %v354 = vld [vmem:[%s226 + $0x364] sm:$0xff]
        %v355 = vld [vmem:[%s226 + $0x36c] sm:$0xff]
        %v356 = vld [vmem:[%s226 + $0x374] sm:$0xff]
        %v357 = vld [vmem:[%s226 + $0x37c] sm:$0xf]
        %v358 = vld [vmem:[%s1] sm:$0xf]
        %v359 = vld [vmem:[%s1 + $0x4] sm:$0xf]
        %v360 = vld [vmem:[%s1 + $0x8] sm:$0xf]
        %v361 = vld [vmem:[%s1 + $0xc] sm:$0xf]
        %v362 = vld [vmem:[%s1 + $0x10] sm:$0xf]
        %v363 = vld [vmem:[%s1 + $0x14] sm:$0xf]
        %v364 = vld [vmem:[%s1 + $0x18] sm:$0xf]
        %v365 = vld [vmem:[%s1 + $0x1c] sm:$0xf]
        %v366 = vld [vmem:[%s1 + $0x20] sm:$0xf]
        %v367 = vld [vmem:[%s1 + $0x24] sm:$0xf]
        %v368 = vld [vmem:[%s1 + $0x28] sm:$0xf]
        %v369 = vld [vmem:[%s1 + $0x2c] sm:$0xf]
        %v370 = vld [vmem:[%s1 + $0x30] sm:$0xf]
        %v371 = vld [vmem:[%s1 + $0x34] sm:$0xf]
        %v372 = vld [vmem:[%s1 + $0x38] sm:$0xf]
        %v373 = vld [vmem:[%s1 + $0x3c] sm:$0xf]
        %v374 = vld [vmem:[%s1 + $0x40] sm:$0xf]
        %v375 = vld [vmem:[%s1 + $0x44] sm:$0xf]
        %v376 = vld [vmem:[%s1 + $0x48] sm:$0xf]
        %v377 = vld [vmem:[%s1 + $0x4c] sm:$0xf]
        %v378 = vld [vmem:[%s1 + $0x50] sm:$0xf]
        %v379 = vld [vmem:[%s1 + $0x54] sm:$0xf]
        %v380 = vld [vmem:[%s1 + $0x58] sm:$0xf]
        %v381 = vld [vmem:[%s1 + $0x5c] sm:$0xf]
        %v382 = vld [vmem:[%s1 + $0x60] sm:$0xf]
        %v383 = vld [vmem:[%s1 + $0x64] sm:$0xf]
        %v384 = vld [vmem:[%s1 + $0x68] sm:$0xf]
        %v385 = vld [vmem:[%s1 + $0x6c] sm:$0xf]
        %v386 = vld [vmem:[%s1 + $0x70] sm:$0xf]
        %v387 = vld [vmem:[%s1 + $0x74] sm:$0xf]
        %v388 = vld [vmem:[%s1 + $0x78] sm:$0xf]
        %v389 = vld [vmem:[%s1 + $0x7c] sm:$0xf]
        %v390 = vld [vmem:[%s1 + $0x80] sm:$0xf]
        %v391 = vld [vmem:[%s1 + $0x84] sm:$0xf]
        %v392 = vld [vmem:[%s1 + $0x88] sm:$0xf]
        %v393 = vld [vmem:[%s1 + $0x8c] sm:$0xf]
        %v394 = vld [vmem:[%s1 + $0x90] sm:$0xf]
        %v395 = vld [vmem:[%s1 + $0x94] sm:$0xf]
        %v396 = vld [vmem:[%s1 + $0x98] sm:$0xf]
        %v397 = vld [vmem:[%s1 + $0x9c] sm:$0xf]
        %v398 = vld [vmem:[%s1 + $0xa0] sm:$0xf]
        %v399 = vld [vmem:[%s1 + $0xa4] sm:$0xf]
        %v400 = vld [vmem:[%s1 + $0xa8] sm:$0xf]
        %v401 = vld [vmem:[%s1 + $0xac] sm:$0xf]
        %v402 = vld [vmem:[%s1 + $0xb0] sm:$0xf]
        %v403 = vld [vmem:[%s1 + $0xb4] sm:$0xf]
        %v404 = vld [vmem:[%s1 + $0xb8] sm:$0xf]
        %v405 = vld [vmem:[%s1 + $0xbc] sm:$0xf]
        %v406 = vld [vmem:[%s1 + $0xc0] sm:$0xf]
        %v407 = vld [vmem:[%s1 + $0xc4] sm:$0xf]
        %v408 = vld [vmem:[%s1 + $0xc8] sm:$0xf]
        %v409 = vld [vmem:[%s1 + $0xcc] sm:$0xf]
        %v410 = vld [vmem:[%s1 + $0xd0] sm:$0xf]
        %v411 = vld [vmem:[%s1 + $0xd4] sm:$0xf]
        %v412 = vld [vmem:[%s1 + $0xd8] sm:$0xf]
        %v413 = vld [vmem:[%s1 + $0xdc] sm:$0xf]
        %v414 = vld [vmem:[%s1 + $0xe0] sm:$0xf]
        %v415 = vld [vmem:[%s1 + $0xe4] sm:$0xf]
        %v416 = vld [vmem:[%s1 + $0xe8] sm:$0xf]
        %v417 = vld [vmem:[%s1 + $0xec] sm:$0xf]
        %v418 = vld [vmem:[%s1 + $0xf0] sm:$0xf]
        %v419 = vld [vmem:[%s1 + $0xf4] sm:$0xf]
        %v420 = vld [vmem:[%s1 + $0xf8] sm:$0xf]
        %v421 = vld [vmem:[%s1 + $0xfc] sm:$0xf]
        %v422 = vld [vmem:[%s1 + $0x100] sm:$0xf]
        %v423 = vld [vmem:[%s1 + $0x104] sm:$0xf]
        %v424 = vld [vmem:[%s1 + $0x108] sm:$0xf]
        %v425 = vld [vmem:[%s1 + $0x10c] sm:$0xf]
        %v426 = vld [vmem:[%s1 + $0x110] sm:$0xf]
        %v427 = vld [vmem:[%s1 + $0x114] sm:$0xf]
        %v428 = vld [vmem:[%s1 + $0x118] sm:$0xf]
        %v429 = vld [vmem:[%s1 + $0x11c] sm:$0xf]
        %v430 = vld [vmem:[%s1 + $0x120] sm:$0xf]
        %v431 = vld [vmem:[%s1 + $0x124] sm:$0xf]
        %v432 = vld [vmem:[%s1 + $0x128] sm:$0xf]
        %v433 = vld [vmem:[%s1 + $0x12c] sm:$0xf]
        %v434 = vld [vmem:[%s1 + $0x130] sm:$0xf]
        %v435 = vld [vmem:[%s1 + $0x134] sm:$0xf]
        %v436 = vld [vmem:[%s1 + $0x138] sm:$0xf]
        %v437 = vld [vmem:[%s1 + $0x13c] sm:$0xf]
        %v438 = vld [vmem:[%s1 + $0x140] sm:$0xf]
        %v439 = vld [vmem:[%s1 + $0x144] sm:$0xf]
        %v440 = vld [vmem:[%s1 + $0x148] sm:$0xf]
        %v441 = vld [vmem:[%s1 + $0x14c] sm:$0xf]
        %v442 = vld [vmem:[%s1 + $0x150] sm:$0xf]
        %v443 = vld [vmem:[%s1 + $0x154] sm:$0xf]
        %v444 = vld [vmem:[%s1 + $0x158] sm:$0xf]
        %v445 = vld [vmem:[%s1 + $0x15c] sm:$0xf]
        %v446 = vld [vmem:[%s1 + $0x160] sm:$0xf]
        %v447 = vld [vmem:[%s1 + $0x164] sm:$0xf]
        %v448 = vld [vmem:[%s1 + $0x168] sm:$0xf]
        %v449 = vld [vmem:[%s1 + $0x16c] sm:$0xf]
        %v450 = vld [vmem:[%s1 + $0x170] sm:$0xf]
        %v451 = vld [vmem:[%s1 + $0x174] sm:$0xf]
        %v452 = vld [vmem:[%s1 + $0x178] sm:$0xf]
        %v453 = vld [vmem:[%s1 + $0x17c] sm:$0xf]
        %v454 = vld [vmem:[%s1 + $0x180] sm:$0xf]
        %v455 = vld [vmem:[%s1 + $0x184] sm:$0xf]
        %v456 = vld [vmem:[%s2] sm:$0x1]
        %v458 = vlaneseq
        %v459 = vshrl.u32 %v458, 7
        %v460 = vsub.s32 0, %v459
        %v461 = vrot.slane %v456, %v460
        %v591 = vunpack.c.l.b16 %v230
        %v592 = vunpack.c.h.b16 %v230
        %v593 = vunpack.c.l.b16 %v231
        %v594 = vunpack.c.h.b16 %v231
        %v595 = vunpack.c.l.b16 %v232
        %v596 = vunpack.c.h.b16 %v232
        %v597 = vunpack.c.l.b16 %v233
        %v598 = vunpack.c.l.b16 %v234
        %v599 = vunpack.c.h.b16 %v234
        %v600 = vunpack.c.l.b16 %v235
        %v601 = vunpack.c.h.b16 %v235
        %v602 = vunpack.c.l.b16 %v236
        %v603 = vunpack.c.h.b16 %v236
        %v604 = vunpack.c.l.b16 %v237
        %v605 = vunpack.c.l.b16 %v238
        %v606 = vunpack.c.h.b16 %v238
        %v607 = vunpack.c.l.b16 %v239
        %v608 = vunpack.c.h.b16 %v239
        %v609 = vunpack.c.l.b16 %v240
        %v610 = vunpack.c.h.b16 %v240
        %v611 = vunpack.c.l.b16 %v241
        %v612 = vunpack.c.l.b16 %v242
        %v613 = vunpack.c.h.b16 %v242
        %v614 = vunpack.c.l.b16 %v243
        %v615 = vunpack.c.h.b16 %v243
        %v616 = vunpack.c.l.b16 %v244
        %v617 = vunpack.c.h.b16 %v244
        %v618 = vunpack.c.l.b16 %v245
        %v619 = vunpack.c.l.b16 %v246
        %v620 = vunpack.c.h.b16 %v246
        %v621 = vunpack.c.l.b16 %v247
        %v622 = vunpack.c.h.b16 %v247
        %v623 = vunpack.c.l.b16 %v248
        %v624 = vunpack.c.h.b16 %v248
        %v625 = vunpack.c.l.b16 %v249
        %v626 = vunpack.c.l.b16 %v250
        %v627 = vunpack.c.h.b16 %v250
        %v628 = vunpack.c.l.b16 %v251
        %v629 = vunpack.c.h.b16 %v251
        %v630 = vunpack.c.l.b16 %v252
        %v631 = vunpack.c.h.b16 %v252
        %v632 = vunpack.c.l.b16 %v253
        %v633 = vunpack.c.l.b16 %v254
        %v634 = vunpack.c.h.b16 %v254
        %v635 = vunpack.c.l.b16 %v255
        %v636 = vunpack.c.h.b16 %v255
        %v637 = vunpack.c.l.b16 %v256
        %v638 = vunpack.c.h.b16 %v256
        %v639 = vunpack.c.l.b16 %v257
        %v640 = vunpack.c.l.b16 %v258
        %v641 = vunpack.c.h.b16 %v258
        %v642 = vunpack.c.l.b16 %v259
        %v643 = vunpack.c.h.b16 %v259
        %v644 = vunpack.c.l.b16 %v260
        %v645 = vunpack.c.h.b16 %v260
        %v646 = vunpack.c.l.b16 %v261
        %v647 = vunpack.c.l.b16 %v262
        %v648 = vunpack.c.h.b16 %v262
        %v649 = vunpack.c.l.b16 %v263
        %v650 = vunpack.c.h.b16 %v263
        %v651 = vunpack.c.l.b16 %v264
        %v652 = vunpack.c.h.b16 %v264
        %v653 = vunpack.c.l.b16 %v265
        %v654 = vunpack.c.l.b16 %v266
        %v655 = vunpack.c.h.b16 %v266
        %v656 = vunpack.c.l.b16 %v267
        %v657 = vunpack.c.h.b16 %v267
        %v658 = vunpack.c.l.b16 %v268
        %v659 = vunpack.c.h.b16 %v268
        %v660 = vunpack.c.l.b16 %v269
        %v661 = vunpack.c.l.b16 %v270
        %v662 = vunpack.c.h.b16 %v270
        %v663 = vunpack.c.l.b16 %v271
        %v664 = vunpack.c.h.b16 %v271
        %v665 = vunpack.c.l.b16 %v272
        %v666 = vunpack.c.h.b16 %v272
        %v667 = vunpack.c.l.b16 %v273
        %v668 = vunpack.c.l.b16 %v274
        %v669 = vunpack.c.h.b16 %v274
        %v670 = vunpack.c.l.b16 %v275
        %v671 = vunpack.c.h.b16 %v275
        %v672 = vunpack.c.l.b16 %v276
        %v673 = vunpack.c.h.b16 %v276
        %v674 = vunpack.c.l.b16 %v277
        %v675 = vunpack.c.l.b16 %v278
        %v676 = vunpack.c.h.b16 %v278
        %v677 = vunpack.c.l.b16 %v279
        %v678 = vunpack.c.h.b16 %v279
        %v679 = vunpack.c.l.b16 %v280
        %v680 = vunpack.c.h.b16 %v280
        %v681 = vunpack.c.l.b16 %v281
        %v682 = vunpack.c.l.b16 %v282
        %v683 = vunpack.c.h.b16 %v282
        %v684 = vunpack.c.l.b16 %v283
        %v685 = vunpack.c.h.b16 %v283
        %v686 = vunpack.c.l.b16 %v284
        %v687 = vunpack.c.h.b16 %v284
        %v688 = vunpack.c.l.b16 %v285
        %v689 = vunpack.c.l.b16 %v286
        %v690 = vunpack.c.h.b16 %v286
        %v691 = vunpack.c.l.b16 %v287
        %v692 = vunpack.c.h.b16 %v287
        %v693 = vunpack.c.l.b16 %v288
        %v694 = vunpack.c.h.b16 %v288
        %v695 = vunpack.c.l.b16 %v289
        %v696 = vunpack.c.l.b16 %v290
        %v697 = vunpack.c.h.b16 %v290
        %v698 = vunpack.c.l.b16 %v291
        %v699 = vunpack.c.h.b16 %v291
        %v700 = vunpack.c.l.b16 %v292
        %v701 = vunpack.c.h.b16 %v292
        %v702 = vunpack.c.l.b16 %v293
        %v703 = vunpack.c.l.b16 %v294
        %v704 = vunpack.c.h.b16 %v294
        %v705 = vunpack.c.l.b16 %v295
        %v706 = vunpack.c.h.b16 %v295
        %v707 = vunpack.c.l.b16 %v296
        %v708 = vunpack.c.h.b16 %v296
        %v709 = vunpack.c.l.b16 %v297
        %v710 = vunpack.c.l.b16 %v298
        %v711 = vunpack.c.h.b16 %v298
        %v712 = vunpack.c.l.b16 %v299
        %v713 = vunpack.c.h.b16 %v299
        %v714 = vunpack.c.l.b16 %v300
        %v715 = vunpack.c.h.b16 %v300
        %v716 = vunpack.c.l.b16 %v301
        %v717 = vunpack.c.l.b16 %v302
        %v718 = vunpack.c.h.b16 %v302
        %v719 = vunpack.c.l.b16 %v303
        %v720 = vunpack.c.h.b16 %v303
        %v721 = vunpack.c.l.b16 %v304
        %v722 = vunpack.c.h.b16 %v304
        %v723 = vunpack.c.l.b16 %v305
        %v724 = vunpack.c.l.b16 %v306
        %v725 = vunpack.c.h.b16 %v306
        %v726 = vunpack.c.l.b16 %v307
        %v727 = vunpack.c.h.b16 %v307
        %v728 = vunpack.c.l.b16 %v308
        %v729 = vunpack.c.h.b16 %v308
        %v730 = vunpack.c.l.b16 %v309
        %v731 = vunpack.c.l.b16 %v310
        %v732 = vunpack.c.h.b16 %v310
        %v733 = vunpack.c.l.b16 %v311
        %v734 = vunpack.c.h.b16 %v311
        %v735 = vunpack.c.l.b16 %v312
        %v736 = vunpack.c.h.b16 %v312
        %v737 = vunpack.c.l.b16 %v313
        %v738 = vunpack.c.l.b16 %v314
        %v739 = vunpack.c.h.b16 %v314
        %v740 = vunpack.c.l.b16 %v315
        %v741 = vunpack.c.h.b16 %v315
        %v742 = vunpack.c.l.b16 %v316
        %v743 = vunpack.c.h.b16 %v316
        %v744 = vunpack.c.l.b16 %v317
        %v745 = vunpack.c.l.b16 %v318
        %v746 = vunpack.c.h.b16 %v318
        %v747 = vunpack.c.l.b16 %v319
        %v748 = vunpack.c.h.b16 %v319
        %v749 = vunpack.c.l.b16 %v320
        %v750 = vunpack.c.h.b16 %v320
        %v751 = vunpack.c.l.b16 %v321
        %v752 = vunpack.c.l.b16 %v322
        %v753 = vunpack.c.h.b16 %v322
        %v754 = vunpack.c.l.b16 %v323
        %v755 = vunpack.c.h.b16 %v323
        %v756 = vunpack.c.l.b16 %v324
        %v757 = vunpack.c.h.b16 %v324
        %v758 = vunpack.c.l.b16 %v325
        %v759 = vunpack.c.l.b16 %v326
        %v760 = vunpack.c.h.b16 %v326
        %v761 = vunpack.c.l.b16 %v327
        %v762 = vunpack.c.h.b16 %v327
        %v763 = vunpack.c.l.b16 %v328
        %v764 = vunpack.c.h.b16 %v328
        %v765 = vunpack.c.l.b16 %v329
        %v766 = vunpack.c.l.b16 %v330
        %v767 = vunpack.c.h.b16 %v330
        %v768 = vunpack.c.l.b16 %v331
        %v769 = vunpack.c.h.b16 %v331
        %v770 = vunpack.c.l.b16 %v332
        %v771 = vunpack.c.h.b16 %v332
        %v772 = vunpack.c.l.b16 %v333
        %v773 = vunpack.c.l.b16 %v334
        %v774 = vunpack.c.h.b16 %v334
        %v775 = vunpack.c.l.b16 %v335
        %v776 = vunpack.c.h.b16 %v335
        %v777 = vunpack.c.l.b16 %v336
        %v778 = vunpack.c.h.b16 %v336
        %v779 = vunpack.c.l.b16 %v337
        %v780 = vunpack.c.l.b16 %v338
        %v781 = vunpack.c.h.b16 %v338
        %v782 = vunpack.c.l.b16 %v339
        %v783 = vunpack.c.h.b16 %v339
        %v784 = vunpack.c.l.b16 %v340
        %v785 = vunpack.c.h.b16 %v340
        %v786 = vunpack.c.l.b16 %v341
        %v787 = vunpack.c.l.b16 %v342
        %v788 = vunpack.c.h.b16 %v342
        %v789 = vunpack.c.l.b16 %v343
        %v790 = vunpack.c.h.b16 %v343
        %v791 = vunpack.c.l.b16 %v344
        %v792 = vunpack.c.h.b16 %v344
        %v793 = vunpack.c.l.b16 %v345
        %v794 = vunpack.c.l.b16 %v346
        %v795 = vunpack.c.h.b16 %v346
        %v796 = vunpack.c.l.b16 %v347
        %v797 = vunpack.c.h.b16 %v347
        %v798 = vunpack.c.l.b16 %v348
        %v799 = vunpack.c.h.b16 %v348
        %v800 = vunpack.c.l.b16 %v349
        %v801 = vunpack.c.l.b16 %v350
        %v802 = vunpack.c.h.b16 %v350
        %v803 = vunpack.c.l.b16 %v351
        %v804 = vunpack.c.h.b16 %v351
        %v805 = vunpack.c.l.b16 %v352
        %v806 = vunpack.c.h.b16 %v352
        %v807 = vunpack.c.l.b16 %v353
        %v808 = vunpack.c.l.b16 %v354
        %v809 = vunpack.c.h.b16 %v354
        %v810 = vunpack.c.l.b16 %v355
        %v811 = vunpack.c.h.b16 %v355
        %v812 = vunpack.c.l.b16 %v356
        %v813 = vunpack.c.h.b16 %v356
        %v814 = vunpack.c.l.b16 %v357
        %v815 = vpack.c.b16 %v598, %v591
        %v816 = vpack.c.b16 %v599, %v592
        %v817 = vpack.c.b16 %v600, %v593
        %v818 = vpack.c.b16 %v601, %v594
        %v819 = vpack.c.b16 %v602, %v595
        %v820 = vpack.c.b16 %v603, %v596
        %v821 = vpack.c.b16 %v604, %v597
        %v822 = vpack.c.b16 %v612, %v605
        %v823 = vpack.c.b16 %v613, %v606
        %v824 = vpack.c.b16 %v614, %v607
        %v825 = vpack.c.b16 %v615, %v608
        %v826 = vpack.c.b16 %v616, %v609
        %v827 = vpack.c.b16 %v617, %v610
        %v828 = vpack.c.b16 %v618, %v611
        %v829 = vpack.c.b16 %v626, %v619
        %v830 = vpack.c.b16 %v627, %v620
        %v831 = vpack.c.b16 %v628, %v621
        %v832 = vpack.c.b16 %v629, %v622
        %v833 = vpack.c.b16 %v630, %v623
        %v834 = vpack.c.b16 %v631, %v624
        %v835 = vpack.c.b16 %v632, %v625
        %v836 = vpack.c.b16 %v640, %v633
        %v837 = vpack.c.b16 %v641, %v634
        %v838 = vpack.c.b16 %v642, %v635
        %v839 = vpack.c.b16 %v643, %v636
        %v840 = vpack.c.b16 %v644, %v637
        %v841 = vpack.c.b16 %v645, %v638
        %v842 = vpack.c.b16 %v646, %v639
        %v843 = vpack.c.b16 %v654, %v647
        %v844 = vpack.c.b16 %v655, %v648
        %v845 = vpack.c.b16 %v656, %v649
        %v846 = vpack.c.b16 %v657, %v650
        %v847 = vpack.c.b16 %v658, %v651
        %v848 = vpack.c.b16 %v659, %v652
        %v849 = vpack.c.b16 %v660, %v653
        %v850 = vpack.c.b16 %v668, %v661
        %v851 = vpack.c.b16 %v669, %v662
        %v852 = vpack.c.b16 %v670, %v663
        %v853 = vpack.c.b16 %v671, %v664
        %v854 = vpack.c.b16 %v672, %v665
        %v855 = vpack.c.b16 %v673, %v666
        %v856 = vpack.c.b16 %v674, %v667
        %v857 = vpack.c.b16 %v682, %v675
        %v858 = vpack.c.b16 %v683, %v676
        %v859 = vpack.c.b16 %v684, %v677
        %v860 = vpack.c.b16 %v685, %v678
        %v861 = vpack.c.b16 %v686, %v679
        %v862 = vpack.c.b16 %v687, %v680
        %v863 = vpack.c.b16 %v688, %v681
        %v864 = vpack.c.b16 %v696, %v689
        %v865 = vpack.c.b16 %v697, %v690
        %v866 = vpack.c.b16 %v698, %v691
        %v867 = vpack.c.b16 %v699, %v692
        %v868 = vpack.c.b16 %v700, %v693
        %v869 = vpack.c.b16 %v701, %v694
        %v870 = vpack.c.b16 %v702, %v695
        %v871 = vpack.c.b16 %v710, %v703
        %v872 = vpack.c.b16 %v711, %v704
        %v873 = vpack.c.b16 %v712, %v705
        %v874 = vpack.c.b16 %v713, %v706
        %v875 = vpack.c.b16 %v714, %v707
        %v876 = vpack.c.b16 %v715, %v708
        %v877 = vpack.c.b16 %v716, %v709
        %v878 = vpack.c.b16 %v724, %v717
        %v879 = vpack.c.b16 %v725, %v718
        %v880 = vpack.c.b16 %v726, %v719
        %v881 = vpack.c.b16 %v727, %v720
        %v882 = vpack.c.b16 %v728, %v721
        %v883 = vpack.c.b16 %v729, %v722
        %v884 = vpack.c.b16 %v730, %v723
        %v885 = vpack.c.b16 %v738, %v731
        %v886 = vpack.c.b16 %v739, %v732
        %v887 = vpack.c.b16 %v740, %v733
        %v888 = vpack.c.b16 %v741, %v734
        %v889 = vpack.c.b16 %v742, %v735
        %v890 = vpack.c.b16 %v743, %v736
        %v891 = vpack.c.b16 %v744, %v737
        %v892 = vpack.c.b16 %v752, %v745
        %v893 = vpack.c.b16 %v753, %v746
        %v894 = vpack.c.b16 %v754, %v747
        %v895 = vpack.c.b16 %v755, %v748
        %v896 = vpack.c.b16 %v756, %v749
        %v897 = vpack.c.b16 %v757, %v750
        %v898 = vpack.c.b16 %v758, %v751
        %v899 = vpack.c.b16 %v766, %v759
        %v900 = vpack.c.b16 %v767, %v760
        %v901 = vpack.c.b16 %v768, %v761
        %v902 = vpack.c.b16 %v769, %v762
        %v903 = vpack.c.b16 %v770, %v763
        %v904 = vpack.c.b16 %v771, %v764
        %v905 = vpack.c.b16 %v772, %v765
        %v906 = vpack.c.b16 %v780, %v773
        %v907 = vpack.c.b16 %v781, %v774
        %v908 = vpack.c.b16 %v782, %v775
        %v909 = vpack.c.b16 %v783, %v776
        %v910 = vpack.c.b16 %v784, %v777
        %v911 = vpack.c.b16 %v785, %v778
        %v912 = vpack.c.b16 %v786, %v779
        %v913 = vpack.c.b16 %v794, %v787
        %v914 = vpack.c.b16 %v795, %v788
        %v915 = vpack.c.b16 %v796, %v789
        %v916 = vpack.c.b16 %v797, %v790
        %v917 = vpack.c.b16 %v798, %v791
        %v918 = vpack.c.b16 %v799, %v792
        %v919 = vpack.c.b16 %v800, %v793
        %v920 = vpack.c.b16 %v808, %v801
        %v921 = vpack.c.b16 %v809, %v802
        %v922 = vpack.c.b16 %v810, %v803
        %v923 = vpack.c.b16 %v811, %v804
        %v924 = vpack.c.b16 %v812, %v805
        %v925 = vpack.c.b16 %v813, %v806
        %v926 = vpack.c.b16 %v814, %v807
        %v1121 = vunpack.c.l.b16 %v358
        %v1122 = vunpack.c.l.b16 %v359
        %v1123 = vunpack.c.l.b16 %v360
        %v1124 = vunpack.c.l.b16 %v361
        %v1125 = vunpack.c.l.b16 %v362
        %v1126 = vunpack.c.l.b16 %v363
        %v1127 = vunpack.c.l.b16 %v364
        %v1128 = vunpack.c.l.b16 %v365
        %v1129 = vunpack.c.l.b16 %v366
        %v1130 = vunpack.c.l.b16 %v367
        %v1131 = vunpack.c.l.b16 %v368
        %v1132 = vunpack.c.l.b16 %v369
        %v1133 = vunpack.c.l.b16 %v370
        %v1134 = vunpack.c.l.b16 %v371
        %v1135 = vunpack.c.l.b16 %v372
        %v1136 = vunpack.c.l.b16 %v373
        %v1137 = vunpack.c.l.b16 %v374
        %v1138 = vunpack.c.l.b16 %v375
        %v1139 = vunpack.c.l.b16 %v376
        %v1140 = vunpack.c.l.b16 %v377
        %v1141 = vunpack.c.l.b16 %v378
        %v1142 = vunpack.c.l.b16 %v379
        %v1143 = vunpack.c.l.b16 %v380
        %v1144 = vunpack.c.l.b16 %v381
        %v1145 = vunpack.c.l.b16 %v382
        %v1146 = vunpack.c.l.b16 %v383
        %v1147 = vunpack.c.l.b16 %v384
        %v1148 = vunpack.c.l.b16 %v385
        %v1149 = vunpack.c.l.b16 %v386
        %v1150 = vunpack.c.l.b16 %v387
        %v1151 = vunpack.c.l.b16 %v388
        %v1152 = vunpack.c.l.b16 %v389
        %v1153 = vunpack.c.l.b16 %v390
        %v1154 = vunpack.c.l.b16 %v391
        %v1155 = vunpack.c.l.b16 %v392
        %v1156 = vunpack.c.l.b16 %v393
        %v1157 = vunpack.c.l.b16 %v394
        %v1158 = vunpack.c.l.b16 %v395
        %v1159 = vunpack.c.l.b16 %v396
        %v1160 = vunpack.c.l.b16 %v397
        %v1161 = vunpack.c.l.b16 %v398
        %v1162 = vunpack.c.l.b16 %v399
        %v1163 = vunpack.c.l.b16 %v400
        %v1164 = vunpack.c.l.b16 %v401
        %v1165 = vunpack.c.l.b16 %v402
        %v1166 = vunpack.c.l.b16 %v403
        %v1167 = vunpack.c.l.b16 %v404
        %v1168 = vunpack.c.l.b16 %v405
        %v1169 = vunpack.c.l.b16 %v406
        %v1170 = vunpack.c.l.b16 %v407
        %v1171 = vunpack.c.l.b16 %v408
        %v1172 = vunpack.c.l.b16 %v409
        %v1173 = vunpack.c.l.b16 %v410
        %v1174 = vunpack.c.l.b16 %v411
        %v1175 = vunpack.c.l.b16 %v412
        %v1176 = vunpack.c.l.b16 %v413
        %v1177 = vunpack.c.l.b16 %v414
        %v1178 = vunpack.c.l.b16 %v415
        %v1179 = vunpack.c.l.b16 %v416
        %v1180 = vunpack.c.l.b16 %v417
        %v1181 = vunpack.c.l.b16 %v418
        %v1182 = vunpack.c.l.b16 %v419
        %v1183 = vunpack.c.l.b16 %v420
        %v1184 = vunpack.c.l.b16 %v421
        %v1185 = vunpack.c.l.b16 %v422
        %v1186 = vunpack.c.l.b16 %v423
        %v1187 = vunpack.c.l.b16 %v424
        %v1188 = vunpack.c.l.b16 %v425
        %v1189 = vunpack.c.l.b16 %v426
        %v1190 = vunpack.c.l.b16 %v427
        %v1191 = vunpack.c.l.b16 %v428
        %v1192 = vunpack.c.l.b16 %v429
        %v1193 = vunpack.c.l.b16 %v430
        %v1194 = vunpack.c.l.b16 %v431
        %v1195 = vunpack.c.l.b16 %v432
        %v1196 = vunpack.c.l.b16 %v433
        %v1197 = vunpack.c.l.b16 %v434
        %v1198 = vunpack.c.l.b16 %v435
        %v1199 = vunpack.c.l.b16 %v436
        %v1200 = vunpack.c.l.b16 %v437
        %v1201 = vunpack.c.l.b16 %v438
        %v1202 = vunpack.c.l.b16 %v439
        %v1203 = vunpack.c.l.b16 %v440
        %v1204 = vunpack.c.l.b16 %v441
        %v1205 = vunpack.c.l.b16 %v442
        %v1206 = vunpack.c.l.b16 %v443
        %v1207 = vunpack.c.l.b16 %v444
        %v1208 = vunpack.c.l.b16 %v445
        %v1209 = vunpack.c.l.b16 %v446
        %v1210 = vunpack.c.l.b16 %v447
        %v1211 = vunpack.c.l.b16 %v448
        %v1212 = vunpack.c.l.b16 %v449
        %v1213 = vunpack.c.l.b16 %v450
        %v1214 = vunpack.c.l.b16 %v451
        %v1215 = vunpack.c.l.b16 %v452
        %v1216 = vunpack.c.l.b16 %v453
        %v1217 = vunpack.c.l.b16 %v454
        %v1218 = vunpack.c.l.b16 %v455
        %v1219 = vpack.c.b16 %v1122, %v1121
        %v1220 = vpack.c.b16 %v1124, %v1123
        %v1221 = vpack.c.b16 %v1126, %v1125
        %v1222 = vpack.c.b16 %v1128, %v1127
        %v1223 = vpack.c.b16 %v1130, %v1129
        %v1224 = vpack.c.b16 %v1132, %v1131
        %v1225 = vpack.c.b16 %v1134, %v1133
        %v1226 = vpack.c.b16 %v1136, %v1135
        %v1227 = vpack.c.b16 %v1138, %v1137
        %v1228 = vpack.c.b16 %v1140, %v1139
        %v1229 = vpack.c.b16 %v1142, %v1141
        %v1230 = vpack.c.b16 %v1144, %v1143
        %v1231 = vpack.c.b16 %v1146, %v1145
        %v1232 = vpack.c.b16 %v1148, %v1147
        %v1233 = vpack.c.b16 %v1150, %v1149
        %v1234 = vpack.c.b16 %v1152, %v1151
        %v1235 = vpack.c.b16 %v1154, %v1153
        %v1236 = vpack.c.b16 %v1156, %v1155
        %v1237 = vpack.c.b16 %v1158, %v1157
        %v1238 = vpack.c.b16 %v1160, %v1159
        %v1239 = vpack.c.b16 %v1162, %v1161
        %v1240 = vpack.c.b16 %v1164, %v1163
        %v1241 = vpack.c.b16 %v1166, %v1165
        %v1242 = vpack.c.b16 %v1168, %v1167
        %v1243 = vpack.c.b16 %v1170, %v1169
        %v1244 = vpack.c.b16 %v1172, %v1171
        %v1245 = vpack.c.b16 %v1174, %v1173
        %v1246 = vpack.c.b16 %v1176, %v1175
        %v1247 = vpack.c.b16 %v1178, %v1177
        %v1248 = vpack.c.b16 %v1180, %v1179
        %v1249 = vpack.c.b16 %v1182, %v1181
        %v1250 = vpack.c.b16 %v1184, %v1183
        %v1251 = vpack.c.b16 %v1186, %v1185
        %v1252 = vpack.c.b16 %v1188, %v1187
        %v1253 = vpack.c.b16 %v1190, %v1189
        %v1254 = vpack.c.b16 %v1192, %v1191
        %v1255 = vpack.c.b16 %v1194, %v1193
        %v1256 = vpack.c.b16 %v1196, %v1195
        %v1257 = vpack.c.b16 %v1198, %v1197
        %v1258 = vpack.c.b16 %v1200, %v1199
        %v1259 = vpack.c.b16 %v1202, %v1201
        %v1260 = vpack.c.b16 %v1204, %v1203
        %v1261 = vpack.c.b16 %v1206, %v1205
        %v1262 = vpack.c.b16 %v1208, %v1207
        %v1263 = vpack.c.b16 %v1210, %v1209
        %v1264 = vpack.c.b16 %v1212, %v1211
        %v1265 = vpack.c.b16 %v1214, %v1213
        %v1266 = vpack.c.b16 %v1216, %v1215
        %v1267 = vpack.c.b16 %v1218, %v1217
        %vm1317 = vcmask 130048
        %v1319 = vsel %vm1317, %v821, 0
        %v1322 = vsel %vm1317, %v828, 0
        %v1325 = vsel %vm1317, %v835, 0
        %v1328 = vsel %vm1317, %v842, 0
        %v1331 = vsel %vm1317, %v849, 0
        %v1334 = vsel %vm1317, %v856, 0
        %v1337 = vsel %vm1317, %v863, 0
        %v1340 = vsel %vm1317, %v870, 0
        %v1343 = vsel %vm1317, %v877, 0
        %v1346 = vsel %vm1317, %v884, 0
        %v1349 = vsel %vm1317, %v891, 0
        %v1352 = vsel %vm1317, %v898, 0
        %v1355 = vsel %vm1317, %v905, 0
        %v1358 = vsel %vm1317, %v912, 0
        %v1361 = vsel %vm1317, %v919, 0
        %v1364 = vsel %vm1317, %v926, 0
        %1366 = vmatprep.subr.bf16.mxu0 0
        %1367 = vmatpush1.bf16.msra.mxu0 %v1219
        %1368 = vmatprep.subr.bf16.mxu0 0
        %1369 = vmatpush1.bf16.msra.mxu0 %v1220
        %1370 = vmatprep.subr.bf16.mxu0 0
        %1371 = vmatpush1.bf16.msra.mxu0 %v1221
        %1372 = vmatprep.subr.bf16.mxu0 0
        %1373 = vmatpush1.bf16.msra.mxu0 %v1222
        %1374 = vmatprep.subr.bf16.mxu0 0
        %1375 = vmatpush1.bf16.msra.mxu0 %v1223
        %1376 = vmatprep.subr.bf16.mxu0 0
        %1377 = vmatpush1.bf16.msra.mxu0 %v1224
        %1378 = vmatprep.subr.bf16.mxu0 0
        %1379 = vmatpush1.bf16.msra.mxu0 %v1225
        %1380 = vmatprep.subr.bf16.mxu0 0
        %1381 = vmatpush1.bf16.msra.mxu0 %v1226
        %1382 = vmatprep.subr.bf16.mxu0 0
        %1383 = vmatpush1.bf16.msra.mxu0 %v1227
        %1384 = vmatprep.subr.bf16.mxu0 0
        %1385 = vmatpush1.bf16.msra.mxu0 %v1228
        %1386 = vmatprep.subr.bf16.mxu0 0
        %1387 = vmatpush1.bf16.msra.mxu0 %v1229
        %1388 = vmatprep.subr.bf16.mxu0 0
        %1389 = vmatpush1.bf16.msra.mxu0 %v1230
        %1390 = vmatprep.subr.bf16.mxu0 0
        %1391 = vmatpush1.bf16.msra.mxu0 %v1231
        %1392 = vmatprep.subr.bf16.mxu0 0
        %1393 = vmatpush1.bf16.msra.mxu0 %v1232
        %1394 = vmatprep.subr.bf16.mxu0 0
        %1395 = vmatpush1.bf16.msra.mxu0 %v1233
        %1396 = vmatprep.subr.bf16.mxu0 0
        %1397 = vmatpush1.bf16.msra.mxu0 %v1234
        %1398 = vmatprep.mubr.bf16.mxu0 %v816
        %1399 = vmatmul.mubr.bf16.gmra.mrb[0].mxu0 %v815
        %v1400 = vpop.f32.mrb[0].mxu0
        %v1401 = vadd.f32 %v461, %v1400
        %v1402 = vpop.f32.mrb[0].mxu0
        %v1403 = vpop.f32.mrb[0].mxu0
        %v1404 = vadd.f32 %v461, %v1403
        %v1405 = vpop.f32.mrb[0].mxu0
        %1406 = vmatprep.mubr.bf16.mxu0 %v823
        %1407 = vmatmul.mubr.bf16.gmra.mrb[0].mxu0 %v822
        %v1408 = vpop.f32.mrb[0].mxu0
        %v1409 = vadd.f32 %v461, %v1408
        %v1410 = vpop.f32.mrb[0].mxu0
        %v1411 = vpop.f32.mrb[0].mxu0
        %v1412 = vadd.f32 %v461, %v1411
        %v1413 = vpop.f32.mrb[0].mxu0
        %1414 = vmatprep.mubr.bf16.mxu0 %v830
        %1415 = vmatmul.mubr.bf16.gmra.mrb[0].mxu0 %v829
        %v1416 = vpop.f32.mrb[0].mxu0
        %v1417 = vadd.f32 %v461, %v1416
        %v1418 = vpop.f32.mrb[0].mxu0
        %v1419 = vpop.f32.mrb[0].mxu0
        %v1420 = vadd.f32 %v461, %v1419
        %v1421 = vpop.f32.mrb[0].mxu0
        %1422 = vmatprep.mubr.bf16.mxu0 %v837
        %1423 = vmatmul.mubr.bf16.gmra.mrb[0].mxu0 %v836
        %v1424 = vpop.f32.mrb[0].mxu0
        %v1425 = vadd.f32 %v461, %v1424
        %v1426 = vpop.f32.mrb[0].mxu0
        %v1427 = vpop.f32.mrb[0].mxu0
        %v1428 = vadd.f32 %v461, %v1427
        %v1429 = vpop.f32.mrb[0].mxu0
        %1430 = vmatprep.mubr.bf16.mxu0 %v844
        %1431 = vmatmul.mubr.bf16.gmra.mrb[0].mxu0 %v843
        %v1432 = vpop.f32.mrb[0].mxu0
        %v1433 = vadd.f32 %v461, %v1432
        %v1434 = vpop.f32.mrb[0].mxu0
        %v1435 = vpop.f32.mrb[0].mxu0
        %v1436 = vadd.f32 %v461, %v1435
        %v1437 = vpop.f32.mrb[0].mxu0
        %1438 = vmatprep.mubr.bf16.mxu0 %v851
        %1439 = vmatmul.mubr.bf16.gmra.mrb[0].mxu0 %v850
        %v1440 = vpop.f32.mrb[0].mxu0
        %v1441 = vadd.f32 %v461, %v1440
        %v1442 = vpop.f32.mrb[0].mxu0
        %v1443 = vpop.f32.mrb[0].mxu0
        %v1444 = vadd.f32 %v461, %v1443
        %v1445 = vpop.f32.mrb[0].mxu0
        %1446 = vmatprep.mubr.bf16.mxu0 %v858
        %1447 = vmatmul.mubr.bf16.gmra.mrb[0].mxu0 %v857
        %v1448 = vpop.f32.mrb[0].mxu0
        %v1449 = vadd.f32 %v461, %v1448
        %v1450 = vpop.f32.mrb[0].mxu0
        %v1451 = vpop.f32.mrb[0].mxu0
        %v1452 = vadd.f32 %v461, %v1451
        %v1453 = vpop.f32.mrb[0].mxu0
        %1454 = vmatprep.mubr.bf16.mxu0 %v865
        %1455 = vmatmul.mubr.bf16.gmra.mrb[0].mxu0 %v864
        %v1456 = vpop.f32.mrb[0].mxu0
        %v1457 = vadd.f32 %v461, %v1456
        %v1458 = vpop.f32.mrb[0].mxu0
        %v1459 = vpop.f32.mrb[0].mxu0
        %v1460 = vadd.f32 %v461, %v1459
        %v1461 = vpop.f32.mrb[0].mxu0
        %1462 = vmatprep.mubr.bf16.mxu0 %v872
        %1463 = vmatmul.mubr.bf16.gmra.mrb[0].mxu0 %v871
        %v1464 = vpop.f32.mrb[0].mxu0
        %v1465 = vadd.f32 %v461, %v1464
        %v1466 = vpop.f32.mrb[0].mxu0
        %v1467 = vpop.f32.mrb[0].mxu0
        %v1468 = vadd.f32 %v461, %v1467
        %v1469 = vpop.f32.mrb[0].mxu0
        %1470 = vmatprep.mubr.bf16.mxu0 %v879
        %1471 = vmatmul.mubr.bf16.gmra.mrb[0].mxu0 %v878
        %v1472 = vpop.f32.mrb[0].mxu0
        %v1473 = vadd.f32 %v461, %v1472
        %v1474 = vpop.f32.mrb[0].mxu0
        %v1475 = vpop.f32.mrb[0].mxu0
        %v1476 = vadd.f32 %v461, %v1475
        %v1477 = vpop.f32.mrb[0].mxu0
        %1478 = vmatprep.mubr.bf16.mxu0 %v886
        %1479 = vmatmul.mubr.bf16.gmra.mrb[0].mxu0 %v885
        %v1480 = vpop.f32.mrb[0].mxu0
        %v1481 = vadd.f32 %v461, %v1480
        %v1482 = vpop.f32.mrb[0].mxu0
        %v1483 = vpop.f32.mrb[0].mxu0
        %v1484 = vadd.f32 %v461, %v1483
        %v1485 = vpop.f32.mrb[0].mxu0
        %1486 = vmatprep.mubr.bf16.mxu0 %v893
        %1487 = vmatmul.mubr.bf16.gmra.mrb[0].mxu0 %v892
        %v1488 = vpop.f32.mrb[0].mxu0
        %v1489 = vadd.f32 %v461, %v1488
        %v1490 = vpop.f32.mrb[0].mxu0
        %v1491 = vpop.f32.mrb[0].mxu0
        %v1492 = vadd.f32 %v461, %v1491
        %v1493 = vpop.f32.mrb[0].mxu0
        %1494 = vmatprep.mubr.bf16.mxu0 %v900
        %1495 = vmatmul.mubr.bf16.gmra.mrb[0].mxu0 %v899
        %v1496 = vpop.f32.mrb[0].mxu0
        %v1497 = vadd.f32 %v461, %v1496
        %v1498 = vpop.f32.mrb[0].mxu0
        %v1499 = vpop.f32.mrb[0].mxu0
        %v1500 = vadd.f32 %v461, %v1499
        %v1501 = vpop.f32.mrb[0].mxu0
        %1502 = vmatprep.mubr.bf16.mxu0 %v907
        %1503 = vmatmul.mubr.bf16.gmra.mrb[0].mxu0 %v906
        %v1504 = vpop.f32.mrb[0].mxu0
        %v1505 = vadd.f32 %v461, %v1504
        %v1506 = vpop.f32.mrb[0].mxu0
        %v1507 = vpop.f32.mrb[0].mxu0
        %v1508 = vadd.f32 %v461, %v1507
        %v1509 = vpop.f32.mrb[0].mxu0
        %1510 = vmatprep.mubr.bf16.mxu0 %v914
        %1511 = vmatmul.mubr.bf16.gmra.mrb[0].mxu0 %v913
        %v1512 = vpop.f32.mrb[0].mxu0
        %v1513 = vadd.f32 %v461, %v1512
        %v1514 = vpop.f32.mrb[0].mxu0
        %v1515 = vpop.f32.mrb[0].mxu0
        %v1516 = vadd.f32 %v461, %v1515
        %v1517 = vpop.f32.mrb[0].mxu0
        %1518 = vmatprep.mubr.bf16.mxu0 %v921
        %1519 = vmatmul.mubr.bf16.gmra.mrb[0].mxu0 %v920
        %v1520 = vpop.f32.mrb[0].mxu0
        %v1521 = vadd.f32 %v461, %v1520
        %v1522 = vpop.f32.mrb[0].mxu0
        %v1523 = vpop.f32.mrb[0].mxu0
        %v1524 = vadd.f32 %v461, %v1523
        %v1525 = vpop.f32.mrb[0].mxu0
        %1526 = vdwg.mxu0
        %1527 = vmatprep.subr.bf16.mxu0 0
        %1528 = vmatpush1.bf16.msra.mxu0 %v1235
        %1529 = vmatprep.subr.bf16.mxu0 0
        %1530 = vmatpush1.bf16.msra.mxu0 %v1236
        %1531 = vmatprep.subr.bf16.mxu0 0
        %1532 = vmatpush1.bf16.msra.mxu0 %v1237
        %1533 = vmatprep.subr.bf16.mxu0 0
        %1534 = vmatpush1.bf16.msra.mxu0 %v1238
        %1535 = vmatprep.subr.bf16.mxu0 0
        %1536 = vmatpush1.bf16.msra.mxu0 %v1239
        %1537 = vmatprep.subr.bf16.mxu0 0
        %1538 = vmatpush1.bf16.msra.mxu0 %v1240
        %1539 = vmatprep.subr.bf16.mxu0 0
        %1540 = vmatpush1.bf16.msra.mxu0 %v1241
        %1541 = vmatprep.subr.bf16.mxu0 0
        %1542 = vmatpush1.bf16.msra.mxu0 %v1242
        %1543 = vmatprep.subr.bf16.mxu0 0
        %1544 = vmatpush1.bf16.msra.mxu0 %v1243
        %1545 = vmatprep.subr.bf16.mxu0 0
        %1546 = vmatpush1.bf16.msra.mxu0 %v1244
        %1547 = vmatprep.subr.bf16.mxu0 0
        %1548 = vmatpush1.bf16.msra.mxu0 %v1245
        %1549 = vmatprep.subr.bf16.mxu0 0
        %1550 = vmatpush1.bf16.msra.mxu0 %v1246
        %1551 = vmatprep.subr.bf16.mxu0 0
        %1552 = vmatpush1.bf16.msra.mxu0 %v1247
        %1553 = vmatprep.subr.bf16.mxu0 0
        %1554 = vmatpush1.bf16.msra.mxu0 %v1248
        %1555 = vmatprep.subr.bf16.mxu0 0
        %1556 = vmatpush1.bf16.msra.mxu0 %v1249
        %1557 = vmatprep.subr.bf16.mxu0 0
        %1558 = vmatpush1.bf16.msra.mxu0 %v1250
        %1559 = vmatprep.mubr.bf16.mxu0 %v818
        %1560 = vmatmul.mubr.bf16.gmra.mrb[0].mxu0 %v817
        %v1561 = vpop.f32.mrb[0].mxu0
        %v1562 = vadd.f32 %v1401, %v1561
        %v1563 = vpop.f32.mrb[0].mxu0
        %v1564 = vpop.f32.mrb[0].mxu0
        %v1565 = vadd.f32 %v1404, %v1564
        %v1566 = vpop.f32.mrb[0].mxu0
        %1567 = vmatprep.mubr.bf16.mxu0 %v825
        %1568 = vmatmul.mubr.bf16.gmra.mrb[0].mxu0 %v824
        %v1569 = vpop.f32.mrb[0].mxu0
        %v1570 = vadd.f32 %v1409, %v1569
        %v1571 = vpop.f32.mrb[0].mxu0
        %v1572 = vpop.f32.mrb[0].mxu0
        %v1573 = vadd.f32 %v1412, %v1572
        %v1574 = vpop.f32.mrb[0].mxu0
        %1575 = vmatprep.mubr.bf16.mxu0 %v832
        %1576 = vmatmul.mubr.bf16.gmra.mrb[0].mxu0 %v831
        %v1577 = vpop.f32.mrb[0].mxu0
        %v1578 = vadd.f32 %v1417, %v1577
        %v1579 = vpop.f32.mrb[0].mxu0
        %v1580 = vpop.f32.mrb[0].mxu0
        %v1581 = vadd.f32 %v1420, %v1580
        %v1582 = vpop.f32.mrb[0].mxu0
        %1583 = vmatprep.mubr.bf16.mxu0 %v839
        %1584 = vmatmul.mubr.bf16.gmra.mrb[0].mxu0 %v838
        %v1585 = vpop.f32.mrb[0].mxu0
        %v1586 = vadd.f32 %v1425, %v1585
        %v1587 = vpop.f32.mrb[0].mxu0
        %v1588 = vpop.f32.mrb[0].mxu0
        %v1589 = vadd.f32 %v1428, %v1588
        %v1590 = vpop.f32.mrb[0].mxu0
        %1591 = vmatprep.mubr.bf16.mxu0 %v846
        %1592 = vmatmul.mubr.bf16.gmra.mrb[0].mxu0 %v845
        %v1593 = vpop.f32.mrb[0].mxu0
        %v1594 = vadd.f32 %v1433, %v1593
        %v1595 = vpop.f32.mrb[0].mxu0
        %v1596 = vpop.f32.mrb[0].mxu0
        %v1597 = vadd.f32 %v1436, %v1596
        %v1598 = vpop.f32.mrb[0].mxu0
        %1599 = vmatprep.mubr.bf16.mxu0 %v853
        %1600 = vmatmul.mubr.bf16.gmra.mrb[0].mxu0 %v852
        %v1601 = vpop.f32.mrb[0].mxu0
        %v1602 = vadd.f32 %v1441, %v1601
        %v1603 = vpop.f32.mrb[0].mxu0
        %v1604 = vpop.f32.mrb[0].mxu0
        %v1605 = vadd.f32 %v1444, %v1604
        %v1606 = vpop.f32.mrb[0].mxu0
        %1607 = vmatprep.mubr.bf16.mxu0 %v860
        %1608 = vmatmul.mubr.bf16.gmra.mrb[0].mxu0 %v859
        %v1609 = vpop.f32.mrb[0].mxu0
        %v1610 = vadd.f32 %v1449, %v1609
        %v1611 = vpop.f32.mrb[0].mxu0
        %v1612 = vpop.f32.mrb[0].mxu0
        %v1613 = vadd.f32 %v1452, %v1612
        %v1614 = vpop.f32.mrb[0].mxu0
        %1615 = vmatprep.mubr.bf16.mxu0 %v867
        %1616 = vmatmul.mubr.bf16.gmra.mrb[0].mxu0 %v866
        %v1617 = vpop.f32.mrb[0].mxu0
        %v1618 = vadd.f32 %v1457, %v1617
        %v1619 = vpop.f32.mrb[0].mxu0
        %v1620 = vpop.f32.mrb[0].mxu0
        %v1621 = vadd.f32 %v1460, %v1620
        %v1622 = vpop.f32.mrb[0].mxu0
        %1623 = vmatprep.mubr.bf16.mxu0 %v874
        %1624 = vmatmul.mubr.bf16.gmra.mrb[0].mxu0 %v873
        %v1625 = vpop.f32.mrb[0].mxu0
        %v1626 = vadd.f32 %v1465, %v1625
        %v1627 = vpop.f32.mrb[0].mxu0
        %v1628 = vpop.f32.mrb[0].mxu0
        %v1629 = vadd.f32 %v1468, %v1628
        %v1630 = vpop.f32.mrb[0].mxu0
        %1631 = vmatprep.mubr.bf16.mxu0 %v881
        %1632 = vmatmul.mubr.bf16.gmra.mrb[0].mxu0 %v880
        %v1633 = vpop.f32.mrb[0].mxu0
        %v1634 = vadd.f32 %v1473, %v1633
        %v1635 = vpop.f32.mrb[0].mxu0
        %v1636 = vpop.f32.mrb[0].mxu0
        %v1637 = vadd.f32 %v1476, %v1636
        %v1638 = vpop.f32.mrb[0].mxu0
        %1639 = vmatprep.mubr.bf16.mxu0 %v888
        %1640 = vmatmul.mubr.bf16.gmra.mrb[0].mxu0 %v887
        %v1641 = vpop.f32.mrb[0].mxu0
        %v1642 = vadd.f32 %v1481, %v1641
        %v1643 = vpop.f32.mrb[0].mxu0
        %v1644 = vpop.f32.mrb[0].mxu0
        %v1645 = vadd.f32 %v1484, %v1644
        %v1646 = vpop.f32.mrb[0].mxu0
        %1647 = vmatprep.mubr.bf16.mxu0 %v895
        %1648 = vmatmul.mubr.bf16.gmra.mrb[0].mxu0 %v894
        %v1649 = vpop.f32.mrb[0].mxu0
        %v1650 = vadd.f32 %v1489, %v1649
        %v1651 = vpop.f32.mrb[0].mxu0
        %v1652 = vpop.f32.mrb[0].mxu0
        %v1653 = vadd.f32 %v1492, %v1652
        %v1654 = vpop.f32.mrb[0].mxu0
        %1655 = vmatprep.mubr.bf16.mxu0 %v902
        %1656 = vmatmul.mubr.bf16.gmra.mrb[0].mxu0 %v901
        %v1657 = vpop.f32.mrb[0].mxu0
        %v1658 = vadd.f32 %v1497, %v1657
        %v1659 = vpop.f32.mrb[0].mxu0
        %v1660 = vpop.f32.mrb[0].mxu0
        %v1661 = vadd.f32 %v1500, %v1660
        %v1662 = vpop.f32.mrb[0].mxu0
        %1663 = vmatprep.mubr.bf16.mxu0 %v909
        %1664 = vmatmul.mubr.bf16.gmra.mrb[0].mxu0 %v908
        %v1665 = vpop.f32.mrb[0].mxu0
        %v1666 = vadd.f32 %v1505, %v1665
        %v1667 = vpop.f32.mrb[0].mxu0
        %v1668 = vpop.f32.mrb[0].mxu0
        %v1669 = vadd.f32 %v1508, %v1668
        %v1670 = vpop.f32.mrb[0].mxu0
        %1671 = vmatprep.mubr.bf16.mxu0 %v916
        %1672 = vmatmul.mubr.bf16.gmra.mrb[0].mxu0 %v915
        %v1673 = vpop.f32.mrb[0].mxu0
        %v1674 = vadd.f32 %v1513, %v1673
        %v1675 = vpop.f32.mrb[0].mxu0
        %v1676 = vpop.f32.mrb[0].mxu0
        %v1677 = vadd.f32 %v1516, %v1676
        %v1678 = vpop.f32.mrb[0].mxu0
        %1679 = vmatprep.mubr.bf16.mxu0 %v923
        %1680 = vmatmul.mubr.bf16.gmra.mrb[0].mxu0 %v922
        %v1681 = vpop.f32.mrb[0].mxu0
        %v1682 = vadd.f32 %v1521, %v1681
        %v1683 = vpop.f32.mrb[0].mxu0
        %v1684 = vpop.f32.mrb[0].mxu0
        %v1685 = vadd.f32 %v1524, %v1684
        %v1686 = vpop.f32.mrb[0].mxu0
        %1687 = vdwg.mxu0
        %1688 = vmatprep.subr.bf16.mxu0 0
        %1689 = vmatpush1.bf16.msra.mxu0 %v1251
        %1690 = vmatprep.subr.bf16.mxu0 0
        %1691 = vmatpush1.bf16.msra.mxu0 %v1252
        %1692 = vmatprep.subr.bf16.mxu0 0
        %1693 = vmatpush1.bf16.msra.mxu0 %v1253
        %1694 = vmatprep.subr.bf16.mxu0 0
        %1695 = vmatpush1.bf16.msra.mxu0 %v1254
        %1696 = vmatprep.subr.bf16.mxu0 0
        %1697 = vmatpush1.bf16.msra.mxu0 %v1255
        %1698 = vmatprep.subr.bf16.mxu0 0
        %1699 = vmatpush1.bf16.msra.mxu0 %v1256
        %1700 = vmatprep.subr.bf16.mxu0 0
        %1701 = vmatpush1.bf16.msra.mxu0 %v1257
        %1702 = vmatprep.subr.bf16.mxu0 0
        %1703 = vmatpush1.bf16.msra.mxu0 %v1258
        %1704 = vmatprep.subr.bf16.mxu0 0
        %1705 = vmatpush1.bf16.msra.mxu0 %v1259
        %1706 = vmatprep.subr.bf16.mxu0 0
        %1707 = vmatpush1.bf16.msra.mxu0 %v1260
        %1708 = vmatprep.subr.bf16.mxu0 0
        %1709 = vmatpush1.bf16.msra.mxu0 %v1261
        %1710 = vmatprep.subr.bf16.mxu0 0
        %1711 = vmatpush1.bf16.msra.mxu0 %v1262
        %1712 = vmatprep.subr.bf16.mxu0 0
        %1713 = vmatpush1.bf16.msra.mxu0 %v1263
        %1714 = vmatprep.subr.bf16.mxu0 0
        %1715 = vmatpush1.bf16.msra.mxu0 %v1264
        %1716 = vmatprep.subr.bf16.mxu0 0
        %1717 = vmatpush1.bf16.msra.mxu0 %v1265
        %1718 = vmatprep.subr.bf16.mxu0 0
        %1719 = vmatpush1.bf16.msra.mxu0 %v1266
        %1720 = vmatprep.mubr.bf16.mxu0 %v820
        %1721 = vmatmul.mubr.bf16.gmra.mrb[0].mxu0 %v819
        %v1722 = vpop.f32.mrb[0].mxu0
        %v1723 = vadd.f32 %v1562, %v1722
        %v1724 = vpop.f32.mrb[0].mxu0
        %v1725 = vpop.f32.mrb[0].mxu0
        %v1726 = vadd.f32 %v1565, %v1725
        %v1727 = vpop.f32.mrb[0].mxu0
        %1728 = vmatprep.mubr.bf16.mxu0 %v827
        %1729 = vmatmul.mubr.bf16.gmra.mrb[0].mxu0 %v826
        %v1730 = vpop.f32.mrb[0].mxu0
        %v1731 = vadd.f32 %v1570, %v1730
        %v1732 = vpop.f32.mrb[0].mxu0
        %v1733 = vpop.f32.mrb[0].mxu0
        %v1734 = vadd.f32 %v1573, %v1733
        %v1735 = vpop.f32.mrb[0].mxu0
        %1736 = vmatprep.mubr.bf16.mxu0 %v834
        %1737 = vmatmul.mubr.bf16.gmra.mrb[0].mxu0 %v833
        %v1738 = vpop.f32.mrb[0].mxu0
        %v1739 = vadd.f32 %v1578, %v1738
        %v1740 = vpop.f32.mrb[0].mxu0
        %v1741 = vpop.f32.mrb[0].mxu0
        %v1742 = vadd.f32 %v1581, %v1741
        %v1743 = vpop.f32.mrb[0].mxu0
        %1744 = vmatprep.mubr.bf16.mxu0 %v841
        %1745 = vmatmul.mubr.bf16.gmra.mrb[0].mxu0 %v840
        %v1746 = vpop.f32.mrb[0].mxu0
        %v1747 = vadd.f32 %v1586, %v1746
        %v1748 = vpop.f32.mrb[0].mxu0
        %v1749 = vpop.f32.mrb[0].mxu0
        %v1750 = vadd.f32 %v1589, %v1749
        %v1751 = vpop.f32.mrb[0].mxu0
        %1752 = vmatprep.mubr.bf16.mxu0 %v848
        %1753 = vmatmul.mubr.bf16.gmra.mrb[0].mxu0 %v847
        %v1754 = vpop.f32.mrb[0].mxu0
        %v1755 = vadd.f32 %v1594, %v1754
        %v1756 = vpop.f32.mrb[0].mxu0
        %v1757 = vpop.f32.mrb[0].mxu0
        %v1758 = vadd.f32 %v1597, %v1757
        %v1759 = vpop.f32.mrb[0].mxu0
        %1760 = vmatprep.mubr.bf16.mxu0 %v855
        %1761 = vmatmul.mubr.bf16.gmra.mrb[0].mxu0 %v854
        %v1762 = vpop.f32.mrb[0].mxu0
        %v1763 = vadd.f32 %v1602, %v1762
        %v1764 = vpop.f32.mrb[0].mxu0
        %v1765 = vpop.f32.mrb[0].mxu0
        %v1766 = vadd.f32 %v1605, %v1765
        %v1767 = vpop.f32.mrb[0].mxu0
        %1768 = vmatprep.mubr.bf16.mxu0 %v862
        %1769 = vmatmul.mubr.bf16.gmra.mrb[0].mxu0 %v861
        %v1770 = vpop.f32.mrb[0].mxu0
        %v1771 = vadd.f32 %v1610, %v1770
        %v1772 = vpop.f32.mrb[0].mxu0
        %v1773 = vpop.f32.mrb[0].mxu0
        %v1774 = vadd.f32 %v1613, %v1773
        %v1775 = vpop.f32.mrb[0].mxu0
        %1776 = vmatprep.mubr.bf16.mxu0 %v869
        %1777 = vmatmul.mubr.bf16.gmra.mrb[0].mxu0 %v868
        %v1778 = vpop.f32.mrb[0].mxu0
        %v1779 = vadd.f32 %v1618, %v1778
        %v1780 = vpop.f32.mrb[0].mxu0
        %v1781 = vpop.f32.mrb[0].mxu0
        %v1782 = vadd.f32 %v1621, %v1781
        %v1783 = vpop.f32.mrb[0].mxu0
        %1784 = vmatprep.mubr.bf16.mxu0 %v876
        %1785 = vmatmul.mubr.bf16.gmra.mrb[0].mxu0 %v875
        %v1786 = vpop.f32.mrb[0].mxu0
        %v1787 = vadd.f32 %v1626, %v1786
        %v1788 = vpop.f32.mrb[0].mxu0
        %v1789 = vpop.f32.mrb[0].mxu0
        %v1790 = vadd.f32 %v1629, %v1789
        %v1791 = vpop.f32.mrb[0].mxu0
        %1792 = vmatprep.mubr.bf16.mxu0 %v883
        %1793 = vmatmul.mubr.bf16.gmra.mrb[0].mxu0 %v882
        %v1794 = vpop.f32.mrb[0].mxu0
        %v1795 = vadd.f32 %v1634, %v1794
        %v1796 = vpop.f32.mrb[0].mxu0
        %v1797 = vpop.f32.mrb[0].mxu0
        %v1798 = vadd.f32 %v1637, %v1797
        %v1799 = vpop.f32.mrb[0].mxu0
        %1800 = vmatprep.mubr.bf16.mxu0 %v890
        %1801 = vmatmul.mubr.bf16.gmra.mrb[0].mxu0 %v889
        %v1802 = vpop.f32.mrb[0].mxu0
        %v1803 = vadd.f32 %v1642, %v1802
        %v1804 = vpop.f32.mrb[0].mxu0
        %v1805 = vpop.f32.mrb[0].mxu0
        %v1806 = vadd.f32 %v1645, %v1805
        %v1807 = vpop.f32.mrb[0].mxu0
        %1808 = vmatprep.mubr.bf16.mxu0 %v897
        %1809 = vmatmul.mubr.bf16.gmra.mrb[0].mxu0 %v896
        %v1810 = vpop.f32.mrb[0].mxu0
        %v1811 = vadd.f32 %v1650, %v1810
        %v1812 = vpop.f32.mrb[0].mxu0
        %v1813 = vpop.f32.mrb[0].mxu0
        %v1814 = vadd.f32 %v1653, %v1813
        %v1815 = vpop.f32.mrb[0].mxu0
        %1816 = vmatprep.mubr.bf16.mxu0 %v904
        %1817 = vmatmul.mubr.bf16.gmra.mrb[0].mxu0 %v903
        %v1818 = vpop.f32.mrb[0].mxu0
        %v1819 = vadd.f32 %v1658, %v1818
        %v1820 = vpop.f32.mrb[0].mxu0
        %v1821 = vpop.f32.mrb[0].mxu0
        %v1822 = vadd.f32 %v1661, %v1821
        %v1823 = vpop.f32.mrb[0].mxu0
        %1824 = vmatprep.mubr.bf16.mxu0 %v911
        %1825 = vmatmul.mubr.bf16.gmra.mrb[0].mxu0 %v910
        %v1826 = vpop.f32.mrb[0].mxu0
        %v1827 = vadd.f32 %v1666, %v1826
        %v1828 = vpop.f32.mrb[0].mxu0
        %v1829 = vpop.f32.mrb[0].mxu0
        %v1830 = vadd.f32 %v1669, %v1829
        %v1831 = vpop.f32.mrb[0].mxu0
        %1832 = vmatprep.mubr.bf16.mxu0 %v918
        %1833 = vmatmul.mubr.bf16.gmra.mrb[0].mxu0 %v917
        %v1834 = vpop.f32.mrb[0].mxu0
        %v1835 = vadd.f32 %v1674, %v1834
        %v1836 = vpop.f32.mrb[0].mxu0
        %v1837 = vpop.f32.mrb[0].mxu0
        %v1838 = vadd.f32 %v1677, %v1837
        %v1839 = vpop.f32.mrb[0].mxu0
        %1840 = vmatprep.mubr.bf16.mxu0 %v925
        %1841 = vmatmul.mubr.bf16.gmra.mrb[0].mxu0 %v924
        %v1842 = vpop.f32.mrb[0].mxu0
        %v1843 = vadd.f32 %v1682, %v1842
        %v1844 = vpop.f32.mrb[0].mxu0
        %v1845 = vpop.f32.mrb[0].mxu0
        %v1846 = vadd.f32 %v1685, %v1845
        %v1847 = vpop.f32.mrb[0].mxu0
        %1848 = vdwg.mxu0
        %1849 = vmatprep.subr.bf16.mxu0 0
        %1850 = vmatpush1.bf16.msra.mxu0 %v1267
        %1851 = vmatprep.subr.bf16.mxu0 0
        %1852 = vmatpush1.bf16.msra.mxu0 0
        %1853 = vmatprep.subr.bf16.mxu0 0
        %1854 = vmatpush1.bf16.msra.mxu0 0
        %1855 = vmatprep.subr.bf16.mxu0 0
        %1856 = vmatpush1.bf16.msra.mxu0 0
        %1857 = vmatprep.subr.bf16.mxu0 0
        %1858 = vmatpush1.bf16.msra.mxu0 0
        %1859 = vmatprep.subr.bf16.mxu0 0
        %1860 = vmatpush1.bf16.msra.mxu0 0
        %1861 = vmatprep.subr.bf16.mxu0 0
        %1862 = vmatpush1.bf16.msra.mxu0 0
        %1863 = vmatprep.subr.bf16.mxu0 0
        %1864 = vmatpush1.bf16.msra.mxu0 0
        %1865 = vmatprep.subr.bf16.mxu0 0
        %1866 = vmatpush1.bf16.msra.mxu0 0
        %1867 = vmatprep.subr.bf16.mxu0 0
        %1868 = vmatpush1.bf16.msra.mxu0 0
        %1869 = vmatprep.subr.bf16.mxu0 0
        %1870 = vmatpush1.bf16.msra.mxu0 0
        %1871 = vmatprep.subr.bf16.mxu0 0
        %1872 = vmatpush1.bf16.msra.mxu0 0
        %1873 = vmatprep.subr.bf16.mxu0 0
        %1874 = vmatpush1.bf16.msra.mxu0 0
        %1875 = vmatprep.subr.bf16.mxu0 0
        %1876 = vmatpush1.bf16.msra.mxu0 0
        %1877 = vmatprep.subr.bf16.mxu0 0
        %1878 = vmatpush1.bf16.msra.mxu0 0
        %1879 = vmatprep.subr.bf16.mxu0 0
        %1880 = vmatpush1.bf16.msra.mxu0 0
        %1881 = vmatprep.mubr.bf16.mxu0 0
        %1882 = vmatmul.mubr.bf16.gmra.mrb[0].mxu0 %v1319
        %v1883 = vpop.f32.mrb[0].mxu0
        %v1884 = vadd.f32 %v1723, %v1883
        %v1885 = vpop.f32.mrb[0].mxu0
        %v1886 = vpop.f32.mrb[0].mxu0
        %v1887 = vadd.f32 %v1726, %v1886
        %v1888 = vpop.f32.mrb[0].mxu0
        %1889 = vmatprep.mubr.bf16.mxu0 0
        %1890 = vmatmul.mubr.bf16.gmra.mrb[0].mxu0 %v1322
        %v1891 = vpop.f32.mrb[0].mxu0
        %v1892 = vadd.f32 %v1731, %v1891
        %v1893 = vpop.f32.mrb[0].mxu0
        %v1894 = vpop.f32.mrb[0].mxu0
        %v1895 = vadd.f32 %v1734, %v1894
        %v1896 = vpop.f32.mrb[0].mxu0
        %1897 = vmatprep.mubr.bf16.mxu0 0
        %1898 = vmatmul.mubr.bf16.gmra.mrb[0].mxu0 %v1325
        %v1899 = vpop.f32.mrb[0].mxu0
        %v1900 = vadd.f32 %v1739, %v1899
        %v1901 = vpop.f32.mrb[0].mxu0
        %v1902 = vpop.f32.mrb[0].mxu0
        %v1903 = vadd.f32 %v1742, %v1902
        %v1904 = vpop.f32.mrb[0].mxu0
        %1905 = vmatprep.mubr.bf16.mxu0 0
        %1906 = vmatmul.mubr.bf16.gmra.mrb[0].mxu0 %v1328
        %v1907 = vpop.f32.mrb[0].mxu0
        %v1908 = vadd.f32 %v1747, %v1907
        %v1909 = vpop.f32.mrb[0].mxu0
        %v1910 = vpop.f32.mrb[0].mxu0
        %v1911 = vadd.f32 %v1750, %v1910
        %v1912 = vpop.f32.mrb[0].mxu0
        %1913 = vmatprep.mubr.bf16.mxu0 0
        %1914 = vmatmul.mubr.bf16.gmra.mrb[0].mxu0 %v1331
        %v1915 = vpop.f32.mrb[0].mxu0
        %v1916 = vadd.f32 %v1755, %v1915
        %v1917 = vpop.f32.mrb[0].mxu0
        %v1918 = vpop.f32.mrb[0].mxu0
        %v1919 = vadd.f32 %v1758, %v1918
        %v1920 = vpop.f32.mrb[0].mxu0
        %1921 = vmatprep.mubr.bf16.mxu0 0
        %1922 = vmatmul.mubr.bf16.gmra.mrb[0].mxu0 %v1334
        %v1923 = vpop.f32.mrb[0].mxu0
        %v1924 = vadd.f32 %v1763, %v1923
        %v1925 = vpop.f32.mrb[0].mxu0
        %v1926 = vpop.f32.mrb[0].mxu0
        %v1927 = vadd.f32 %v1766, %v1926
        %v1928 = vpop.f32.mrb[0].mxu0
        %1929 = vmatprep.mubr.bf16.mxu0 0
        %1930 = vmatmul.mubr.bf16.gmra.mrb[0].mxu0 %v1337
        %v1931 = vpop.f32.mrb[0].mxu0
        %v1932 = vadd.f32 %v1771, %v1931
        %v1933 = vpop.f32.mrb[0].mxu0
        %v1934 = vpop.f32.mrb[0].mxu0
        %v1935 = vadd.f32 %v1774, %v1934
        %v1936 = vpop.f32.mrb[0].mxu0
        %1937 = vmatprep.mubr.bf16.mxu0 0
        %1938 = vmatmul.mubr.bf16.gmra.mrb[0].mxu0 %v1340
        %v1939 = vpop.f32.mrb[0].mxu0
        %v1940 = vadd.f32 %v1779, %v1939
        %v1941 = vpop.f32.mrb[0].mxu0
        %v1942 = vpop.f32.mrb[0].mxu0
        %v1943 = vadd.f32 %v1782, %v1942
        %v1944 = vpop.f32.mrb[0].mxu0
        %1945 = vmatprep.mubr.bf16.mxu0 0
        %1946 = vmatmul.mubr.bf16.gmra.mrb[0].mxu0 %v1343
        %v1947 = vpop.f32.mrb[0].mxu0
        %v1948 = vadd.f32 %v1787, %v1947
        %v1949 = vpop.f32.mrb[0].mxu0
        %v1950 = vpop.f32.mrb[0].mxu0
        %v1951 = vadd.f32 %v1790, %v1950
        %v1952 = vpop.f32.mrb[0].mxu0
        %1953 = vmatprep.mubr.bf16.mxu0 0
        %1954 = vmatmul.mubr.bf16.gmra.mrb[0].mxu0 %v1346
        %v1955 = vpop.f32.mrb[0].mxu0
        %v1956 = vadd.f32 %v1795, %v1955
        %v1957 = vpop.f32.mrb[0].mxu0
        %v1958 = vpop.f32.mrb[0].mxu0
        %v1959 = vadd.f32 %v1798, %v1958
        %v1960 = vpop.f32.mrb[0].mxu0
        %1961 = vmatprep.mubr.bf16.mxu0 0
        %1962 = vmatmul.mubr.bf16.gmra.mrb[0].mxu0 %v1349
        %v1963 = vpop.f32.mrb[0].mxu0
        %v1964 = vadd.f32 %v1803, %v1963
        %v1965 = vpop.f32.mrb[0].mxu0
        %v1966 = vpop.f32.mrb[0].mxu0
        %v1967 = vadd.f32 %v1806, %v1966
        %v1968 = vpop.f32.mrb[0].mxu0
        %1969 = vmatprep.mubr.bf16.mxu0 0
        %1970 = vmatmul.mubr.bf16.gmra.mrb[0].mxu0 %v1352
        %v1971 = vpop.f32.mrb[0].mxu0
        %v1972 = vadd.f32 %v1811, %v1971
        %v1973 = vpop.f32.mrb[0].mxu0
        %v1974 = vpop.f32.mrb[0].mxu0
        %v1975 = vadd.f32 %v1814, %v1974
        %v1976 = vpop.f32.mrb[0].mxu0
        %1977 = vmatprep.mubr.bf16.mxu0 0
        %1978 = vmatmul.mubr.bf16.gmra.mrb[0].mxu0 %v1355
        %v1979 = vpop.f32.mrb[0].mxu0
        %v1980 = vadd.f32 %v1819, %v1979
        %v1981 = vpop.f32.mrb[0].mxu0
        %v1982 = vpop.f32.mrb[0].mxu0
        %v1983 = vadd.f32 %v1822, %v1982
        %v1984 = vpop.f32.mrb[0].mxu0
        %1985 = vmatprep.mubr.bf16.mxu0 0
        %1986 = vmatmul.mubr.bf16.gmra.mrb[0].mxu0 %v1358
        %v1987 = vpop.f32.mrb[0].mxu0
        %v1988 = vadd.f32 %v1827, %v1987
        %v1989 = vpop.f32.mrb[0].mxu0
        %v1990 = vpop.f32.mrb[0].mxu0
        %v1991 = vadd.f32 %v1830, %v1990
        %v1992 = vpop.f32.mrb[0].mxu0
        %1993 = vmatprep.mubr.bf16.mxu0 0
        %1994 = vmatmul.mubr.bf16.gmra.mrb[0].mxu0 %v1361
        %v1995 = vpop.f32.mrb[0].mxu0
        %v1996 = vadd.f32 %v1835, %v1995
        %v1997 = vpop.f32.mrb[0].mxu0
        %v1998 = vpop.f32.mrb[0].mxu0
        %v1999 = vadd.f32 %v1838, %v1998
        %v2000 = vpop.f32.mrb[0].mxu0
        %2001 = vmatprep.mubr.bf16.mxu0 0
        %2002 = vmatmul.mubr.bf16.gmra.mrb[0].mxu0 %v1364
        %v2003 = vpop.f32.mrb[0].mxu0
        %v2004 = vadd.f32 %v1843, %v2003
        %v2005 = vpop.f32.mrb[0].mxu0
        %v2006 = vpop.f32.mrb[0].mxu0
        %v2007 = vadd.f32 %v1846, %v2006
        %v2008 = vpop.f32.mrb[0].mxu0
        %2009 = vdwg.mxu0
        %v2010 = vmax.f32 %v1884, 0.0
        %v2011 = vmax.f32 %v1887, 0.0
        %v2012 = vmax.f32 %v1892, 0.0
        %v2013 = vmax.f32 %v1895, 0.0
        %v2014 = vmax.f32 %v1900, 0.0
        %v2015 = vmax.f32 %v1903, 0.0
        %v2016 = vmax.f32 %v1908, 0.0
        %v2017 = vmax.f32 %v1911, 0.0
        %v2018 = vmax.f32 %v1916, 0.0
        %v2019 = vmax.f32 %v1919, 0.0
        %v2020 = vmax.f32 %v1924, 0.0
        %v2021 = vmax.f32 %v1927, 0.0
        %v2022 = vmax.f32 %v1932, 0.0
        %v2023 = vmax.f32 %v1935, 0.0
        %v2024 = vmax.f32 %v1940, 0.0
        %v2025 = vmax.f32 %v1943, 0.0
        %v2026 = vmax.f32 %v1948, 0.0
        %v2027 = vmax.f32 %v1951, 0.0
        %v2028 = vmax.f32 %v1956, 0.0
        %v2029 = vmax.f32 %v1959, 0.0
        %v2030 = vmax.f32 %v1964, 0.0
        %v2031 = vmax.f32 %v1967, 0.0
        %v2032 = vmax.f32 %v1972, 0.0
        %v2033 = vmax.f32 %v1975, 0.0
        %v2034 = vmax.f32 %v1980, 0.0
        %v2035 = vmax.f32 %v1983, 0.0
        %v2036 = vmax.f32 %v1988, 0.0
        %v2037 = vmax.f32 %v1991, 0.0
        %v2038 = vmax.f32 %v1996, 0.0
        %v2039 = vmax.f32 %v1999, 0.0
        %v2040 = vmax.f32 %v2004, 0.0
        %v2041 = vmax.f32 %v2007, 0.0
        %v2042 = vpack.c.bf16 %v2011, %v2010
        %v2043 = vpack.c.bf16 %v2013, %v2012
        %v2044 = vpack.c.bf16 %v2015, %v2014
        %v2045 = vpack.c.bf16 %v2017, %v2016
        %v2046 = vpack.c.bf16 %v2019, %v2018
        %v2047 = vpack.c.bf16 %v2021, %v2020
        %v2048 = vpack.c.bf16 %v2023, %v2022
        %v2049 = vpack.c.bf16 %v2025, %v2024
        %v2050 = vpack.c.bf16 %v2027, %v2026
        %v2051 = vpack.c.bf16 %v2029, %v2028
        %v2052 = vpack.c.bf16 %v2031, %v2030
        %v2053 = vpack.c.bf16 %v2033, %v2032
        %v2054 = vpack.c.bf16 %v2035, %v2034
        %v2055 = vpack.c.bf16 %v2037, %v2036
        %v2056 = vpack.c.bf16 %v2039, %v2038
        %v2057 = vpack.c.bf16 %v2041, %v2040
        %v2058 = vld [vmem:[%s3] sm:$0xf]
        %v2059 = vld [vmem:[%s3 + $0x4] sm:$0xf]
        %v2060 = vld [vmem:[%s3 + $0x8] sm:$0xf]
        %v2061 = vld [vmem:[%s3 + $0xc] sm:$0xf]
        %v2062 = vld [vmem:[%s3 + $0x10] sm:$0xf]
        %v2063 = vld [vmem:[%s3 + $0x14] sm:$0xf]
        %v2064 = vld [vmem:[%s3 + $0x18] sm:$0xf]
        %v2065 = vld [vmem:[%s3 + $0x1c] sm:$0xf]
        %v2066 = vld [vmem:[%s3 + $0x20] sm:$0xf]
        %v2067 = vld [vmem:[%s3 + $0x24] sm:$0xf]
        %v2068 = vld [vmem:[%s3 + $0x28] sm:$0xf]
        %v2069 = vld [vmem:[%s3 + $0x2c] sm:$0xf]
        %v2070 = vld [vmem:[%s3 + $0x30] sm:$0xf]
        %v2071 = vld [vmem:[%s3 + $0x34] sm:$0xf]
        %v2072 = vld [vmem:[%s3 + $0x38] sm:$0xf]
        %v2073 = vld [vmem:[%s3 + $0x3c] sm:$0xf]
        %v2074 = vld [vmem:[%s4] sm:$0x1]
        %v2076 = vlaneseq
        %v2077 = vshrl.u32 %v2076, 7
        %v2078 = vsub.s32 0, %v2077
        %v2079 = vrot.slane %v2074, %v2078
        %v2097 = vunpack.c.l.b16 %v2058
        %v2098 = vunpack.c.l.b16 %v2059
        %v2099 = vunpack.c.l.b16 %v2060
        %v2100 = vunpack.c.l.b16 %v2061
        %v2101 = vunpack.c.l.b16 %v2062
        %v2102 = vunpack.c.l.b16 %v2063
        %v2103 = vunpack.c.l.b16 %v2064
        %v2104 = vunpack.c.l.b16 %v2065
        %v2105 = vunpack.c.l.b16 %v2066
        %v2106 = vunpack.c.l.b16 %v2067
        %v2107 = vunpack.c.l.b16 %v2068
        %v2108 = vunpack.c.l.b16 %v2069
        %v2109 = vunpack.c.l.b16 %v2070
        %v2110 = vunpack.c.l.b16 %v2071
        %v2111 = vunpack.c.l.b16 %v2072
        %v2112 = vunpack.c.l.b16 %v2073
        %v2113 = vpack.c.b16 %v2098, %v2097
        %v2114 = vpack.c.b16 %v2100, %v2099
        %v2115 = vpack.c.b16 %v2102, %v2101
        %v2116 = vpack.c.b16 %v2104, %v2103
        %v2117 = vpack.c.b16 %v2106, %v2105
        %v2118 = vpack.c.b16 %v2108, %v2107
        %v2119 = vpack.c.b16 %v2110, %v2109
        %v2120 = vpack.c.b16 %v2112, %v2111
        %2129 = vmatprep.subr.bf16.mxu0 0
        %2130 = vmatpush1.bf16.msra.mxu0 %v2113
        %2131 = vmatprep.subr.bf16.mxu0 0
        %2132 = vmatpush1.bf16.msra.mxu0 %v2114
        %2133 = vmatprep.subr.bf16.mxu0 0
        %2134 = vmatpush1.bf16.msra.mxu0 %v2115
        %2135 = vmatprep.subr.bf16.mxu0 0
        %2136 = vmatpush1.bf16.msra.mxu0 %v2116
        %2137 = vmatprep.subr.bf16.mxu0 0
        %2138 = vmatpush1.bf16.msra.mxu0 %v2117
        %2139 = vmatprep.subr.bf16.mxu0 0
        %2140 = vmatpush1.bf16.msra.mxu0 %v2118
        %2141 = vmatprep.subr.bf16.mxu0 0
        %2142 = vmatpush1.bf16.msra.mxu0 %v2119
        %2143 = vmatprep.subr.bf16.mxu0 0
        %2144 = vmatpush1.bf16.msra.mxu0 %v2120
        %2145 = vmatprep.subr.bf16.mxu0 0
        %2146 = vmatpush1.bf16.msra.mxu0 0
        %2147 = vmatprep.subr.bf16.mxu0 0
        %2148 = vmatpush1.bf16.msra.mxu0 0
        %2149 = vmatprep.subr.bf16.mxu0 0
        %2150 = vmatpush1.bf16.msra.mxu0 0
        %2151 = vmatprep.subr.bf16.mxu0 0
        %2152 = vmatpush1.bf16.msra.mxu0 0
        %2153 = vmatprep.subr.bf16.mxu0 0
        %2154 = vmatpush1.bf16.msra.mxu0 0
        %2155 = vmatprep.subr.bf16.mxu0 0
        %2156 = vmatpush1.bf16.msra.mxu0 0
        %2157 = vmatprep.subr.bf16.mxu0 0
        %2158 = vmatpush1.bf16.msra.mxu0 0
        %2159 = vmatprep.subr.bf16.mxu0 0
        %2160 = vmatpush1.bf16.msra.mxu0 0
        %2161 = vmatprep.mubr.bf16.mxu0 0
        %2162 = vmatmul.mubr.bf16.gmra.mrb[0].mxu0 %v2042
        %v2163 = vpop.f32.mrb[0].mxu0
        %v2164 = vadd.f32 %v2079, %v2163
        %v2165 = vpop.f32.mrb[0].mxu0
        %v2166 = vpop.f32.mrb[0].mxu0
        %v2167 = vadd.f32 %v2079, %v2166
        %v2168 = vpop.f32.mrb[0].mxu0
        %2169 = vmatprep.mubr.bf16.mxu0 0
        %2170 = vmatmul.mubr.bf16.gmra.mrb[0].mxu0 %v2043
        %v2171 = vpop.f32.mrb[0].mxu0
        %v2172 = vadd.f32 %v2079, %v2171
        %v2173 = vpop.f32.mrb[0].mxu0
        %v2174 = vpop.f32.mrb[0].mxu0
        %v2175 = vadd.f32 %v2079, %v2174
        %v2176 = vpop.f32.mrb[0].mxu0
        %2177 = vmatprep.mubr.bf16.mxu0 0
        %2178 = vmatmul.mubr.bf16.gmra.mrb[0].mxu0 %v2044
        %v2179 = vpop.f32.mrb[0].mxu0
        %v2180 = vadd.f32 %v2079, %v2179
        %v2181 = vpop.f32.mrb[0].mxu0
        %v2182 = vpop.f32.mrb[0].mxu0
        %v2183 = vadd.f32 %v2079, %v2182
        %v2184 = vpop.f32.mrb[0].mxu0
        %2185 = vmatprep.mubr.bf16.mxu0 0
        %2186 = vmatmul.mubr.bf16.gmra.mrb[0].mxu0 %v2045
        %v2187 = vpop.f32.mrb[0].mxu0
        %v2188 = vadd.f32 %v2079, %v2187
        %v2189 = vpop.f32.mrb[0].mxu0
        %v2190 = vpop.f32.mrb[0].mxu0
        %v2191 = vadd.f32 %v2079, %v2190
        %v2192 = vpop.f32.mrb[0].mxu0
        %2193 = vmatprep.mubr.bf16.mxu0 0
        %2194 = vmatmul.mubr.bf16.gmra.mrb[0].mxu0 %v2046
        %v2195 = vpop.f32.mrb[0].mxu0
        %v2196 = vadd.f32 %v2079, %v2195
        %v2197 = vpop.f32.mrb[0].mxu0
        %v2198 = vpop.f32.mrb[0].mxu0
        %v2199 = vadd.f32 %v2079, %v2198
        %v2200 = vpop.f32.mrb[0].mxu0
        %2201 = vmatprep.mubr.bf16.mxu0 0
        %2202 = vmatmul.mubr.bf16.gmra.mrb[0].mxu0 %v2047
        %v2203 = vpop.f32.mrb[0].mxu0
        %v2204 = vadd.f32 %v2079, %v2203
        %v2205 = vpop.f32.mrb[0].mxu0
        %v2206 = vpop.f32.mrb[0].mxu0
        %v2207 = vadd.f32 %v2079, %v2206
        %v2208 = vpop.f32.mrb[0].mxu0
        %2209 = vmatprep.mubr.bf16.mxu0 0
        %2210 = vmatmul.mubr.bf16.gmra.mrb[0].mxu0 %v2048
        %v2211 = vpop.f32.mrb[0].mxu0
        %v2212 = vadd.f32 %v2079, %v2211
        %v2213 = vpop.f32.mrb[0].mxu0
        %v2214 = vpop.f32.mrb[0].mxu0
        %v2215 = vadd.f32 %v2079, %v2214
        %v2216 = vpop.f32.mrb[0].mxu0
        %2217 = vmatprep.mubr.bf16.mxu0 0
        %2218 = vmatmul.mubr.bf16.gmra.mrb[0].mxu0 %v2049
        %v2219 = vpop.f32.mrb[0].mxu0
        %v2220 = vadd.f32 %v2079, %v2219
        %v2221 = vpop.f32.mrb[0].mxu0
        %v2222 = vpop.f32.mrb[0].mxu0
        %v2223 = vadd.f32 %v2079, %v2222
        %v2224 = vpop.f32.mrb[0].mxu0
        %2225 = vmatprep.mubr.bf16.mxu0 0
        %2226 = vmatmul.mubr.bf16.gmra.mrb[0].mxu0 %v2050
        %v2227 = vpop.f32.mrb[0].mxu0
        %v2228 = vadd.f32 %v2079, %v2227
        %v2229 = vpop.f32.mrb[0].mxu0
        %v2230 = vpop.f32.mrb[0].mxu0
        %v2231 = vadd.f32 %v2079, %v2230
        %v2232 = vpop.f32.mrb[0].mxu0
        %2233 = vmatprep.mubr.bf16.mxu0 0
        %2234 = vmatmul.mubr.bf16.gmra.mrb[0].mxu0 %v2051
        %v2235 = vpop.f32.mrb[0].mxu0
        %v2236 = vadd.f32 %v2079, %v2235
        %v2237 = vpop.f32.mrb[0].mxu0
        %v2238 = vpop.f32.mrb[0].mxu0
        %v2239 = vadd.f32 %v2079, %v2238
        %v2240 = vpop.f32.mrb[0].mxu0
        %2241 = vmatprep.mubr.bf16.mxu0 0
        %2242 = vmatmul.mubr.bf16.gmra.mrb[0].mxu0 %v2052
        %v2243 = vpop.f32.mrb[0].mxu0
        %v2244 = vadd.f32 %v2079, %v2243
        %v2245 = vpop.f32.mrb[0].mxu0
        %v2246 = vpop.f32.mrb[0].mxu0
        %v2247 = vadd.f32 %v2079, %v2246
        %v2248 = vpop.f32.mrb[0].mxu0
        %2249 = vmatprep.mubr.bf16.mxu0 0
        %2250 = vmatmul.mubr.bf16.gmra.mrb[0].mxu0 %v2053
        %v2251 = vpop.f32.mrb[0].mxu0
        %v2252 = vadd.f32 %v2079, %v2251
        %v2253 = vpop.f32.mrb[0].mxu0
        %v2254 = vpop.f32.mrb[0].mxu0
        %v2255 = vadd.f32 %v2079, %v2254
        %v2256 = vpop.f32.mrb[0].mxu0
        %2257 = vmatprep.mubr.bf16.mxu0 0
        %2258 = vmatmul.mubr.bf16.gmra.mrb[0].mxu0 %v2054
        %v2259 = vpop.f32.mrb[0].mxu0
        %v2260 = vadd.f32 %v2079, %v2259
        %v2261 = vpop.f32.mrb[0].mxu0
        %v2262 = vpop.f32.mrb[0].mxu0
        %v2263 = vadd.f32 %v2079, %v2262
        %v2264 = vpop.f32.mrb[0].mxu0
        %2265 = vmatprep.mubr.bf16.mxu0 0
        %2266 = vmatmul.mubr.bf16.gmra.mrb[0].mxu0 %v2055
        %v2267 = vpop.f32.mrb[0].mxu0
        %v2268 = vadd.f32 %v2079, %v2267
        %v2269 = vpop.f32.mrb[0].mxu0
        %v2270 = vpop.f32.mrb[0].mxu0
        %v2271 = vadd.f32 %v2079, %v2270
        %v2272 = vpop.f32.mrb[0].mxu0
        %2273 = vmatprep.mubr.bf16.mxu0 0
        %2274 = vmatmul.mubr.bf16.gmra.mrb[0].mxu0 %v2056
        %v2275 = vpop.f32.mrb[0].mxu0
        %v2276 = vadd.f32 %v2079, %v2275
        %v2277 = vpop.f32.mrb[0].mxu0
        %v2278 = vpop.f32.mrb[0].mxu0
        %v2279 = vadd.f32 %v2079, %v2278
        %v2280 = vpop.f32.mrb[0].mxu0
        %2281 = vmatprep.mubr.bf16.mxu0 0
        %2282 = vmatmul.mubr.bf16.gmra.mrb[0].mxu0 %v2057
        %v2283 = vpop.f32.mrb[0].mxu0
        %v2284 = vadd.f32 %v2079, %v2283
        %v2285 = vpop.f32.mrb[0].mxu0
        %v2286 = vpop.f32.mrb[0].mxu0
        %v2287 = vadd.f32 %v2079, %v2286
        %v2288 = vpop.f32.mrb[0].mxu0
        %2289 = vdwg.mxu0
        %2290 = vst [vmem:[%s220] sm:$0xff] %v2164
        %2291 = vst [vmem:[%s220 + $0x8] sm:$0xff] %v2167
        %2292 = vst [vmem:[%s220 + $0x10] sm:$0xff] %v2172
        %2293 = vst [vmem:[%s220 + $0x18] sm:$0xff] %v2175
        %2294 = vst [vmem:[%s220 + $0x20] sm:$0xff] %v2180
        %2295 = vst [vmem:[%s220 + $0x28] sm:$0xff] %v2183
        %2296 = vst [vmem:[%s220 + $0x30] sm:$0xff] %v2188
        %2297 = vst [vmem:[%s220 + $0x38] sm:$0xff] %v2191
        %2298 = vst [vmem:[%s220 + $0x40] sm:$0xff] %v2196
        %2299 = vst [vmem:[%s220 + $0x48] sm:$0xff] %v2199
        %2300 = vst [vmem:[%s220 + $0x50] sm:$0xff] %v2204
        %2301 = vst [vmem:[%s220 + $0x58] sm:$0xff] %v2207
        %2302 = vst [vmem:[%s220 + $0x60] sm:$0xff] %v2212
        %2303 = vst [vmem:[%s220 + $0x68] sm:$0xff] %v2215
        %2304 = vst [vmem:[%s220 + $0x70] sm:$0xff] %v2220
        %2305 = vst [vmem:[%s220 + $0x78] sm:$0xff] %v2223
        %2306 = vst [vmem:[%s220 + $0x80] sm:$0xff] %v2228
        %2307 = vst [vmem:[%s220 + $0x88] sm:$0xff] %v2231
        %2308 = vst [vmem:[%s220 + $0x90] sm:$0xff] %v2236
        %2309 = vst [vmem:[%s220 + $0x98] sm:$0xff] %v2239
        %2310 = vst [vmem:[%s220 + $0xa0] sm:$0xff] %v2244
        %2311 = vst [vmem:[%s220 + $0xa8] sm:$0xff] %v2247
        %2312 = vst [vmem:[%s220 + $0xb0] sm:$0xff] %v2252
        %2313 = vst [vmem:[%s220 + $0xb8] sm:$0xff] %v2255
        %2314 = vst [vmem:[%s220 + $0xc0] sm:$0xff] %v2260
        %2315 = vst [vmem:[%s220 + $0xc8] sm:$0xff] %v2263
        %2316 = vst [vmem:[%s220 + $0xd0] sm:$0xff] %v2268
        %2317 = vst [vmem:[%s220 + $0xd8] sm:$0xff] %v2271
        %2318 = vst [vmem:[%s220 + $0xe0] sm:$0xff] %v2276
        %2319 = vst [vmem:[%s220 + $0xe8] sm:$0xff] %v2279
        %2320 = vst [vmem:[%s220 + $0xf0] sm:$0xff] %v2284
        %2321 = vst [vmem:[%s220 + $0xf8] sm:$0xff] %v2287
        %s2322 = sand.u32 %s137, 1
        %s2323 = scalar_lea.sflag [#allocation3], %s2322
        %s2324 = sand.u32 %s137, 1
        %s2325 = smul.addr %s2324, 256
        %s2326 = scalar_lea.vmem [#allocation2], %s2325
        // Predicated region
        $region41: #{tpu_custom_call.1} parent=39 // pred_check
          %p2327 = pneg %p147
        $region42: #{tpu_custom_call.1} parent=39 // pred_check_branch
          %2329 = sbr.rel (%p2327) target = $region44
        $region43: #{tpu_custom_call.1} parent=39 // pred_region
          %s2330 = smul.u32 32, %s19
          %s2332 = ssub.s32 4096, 4096
          %2333 = vsyncadd %s2323, %s2332
          %s2334 = smul.addr %s2330, 128
          %s2335 = scalar_lea.hbm %s5, %s2334
          %s2336 = sshll.u32 %s2326, 4
          %s2337 = int_to_ptr.vmem [resolvable:$true] %s2336
          %2342 = dma.vmem_to_hbm [thread:$0]  %s2337, 4096, %s2335, %s2323, 128, 128, 8
        $region44: #{tpu_custom_call.1} parent=39 // pred_fallthru
          _
      $region40: #{tpu_custom_call.1} parent=5 // pred_fallthru
        _
      %p2343 = scmp.le.s32.totalorder 2, %s14
      // Predicated region
      $region45: #{tpu_custom_call.1} parent=5 // pred_check
        %p2344 = pneg %p2343
      $region46: #{tpu_custom_call.1} parent=5 // pred_check_branch
        %2346 = sbr.rel (%p2344) target = $region48
      $region47: #{tpu_custom_call.1} parent=5 // pred_region
        %s2347 = ssub.s32 %s14, 2
        // Predicated region
        $region49: #{tpu_custom_call.1} parent=47 // pred_check
          %p2348 = pneg %p153
        $region50: #{tpu_custom_call.1} parent=47 // pred_check_branch
          %2350 = sbr.rel (%p2348) target = $region52
        $region51: #{tpu_custom_call.1} parent=47 // pred_region
          %s2351 = sand.u32 %s138, 1
          %s2352 = scalar_lea.sflag [#allocation3], %s2351
          %s2353 = sand.u32 %s138, 1
          %s2354 = smul.addr %s2353, 256
          %s2355 = scalar_lea.vmem [#allocation2], %s2354
          %2356 = dma.done %s2352, 4096
        $region52: #{tpu_custom_call.1} parent=47 // pred_fallthru
          _
      $region48: #{tpu_custom_call.1} parent=5 // pred_fallthru
        _
    $region6: #{tpu_custom_call.1} parent=1 // loop_footer
      %s18 = sadd.s32 1, %s14
    $region7: #{tpu_custom_call.1} parent=1 // loop_footer_branch
      %13 = sbr.rel target = $region3
    $region8: #{tpu_custom_call.1} parent=1 // loop_exit
      _
    %2357 = vsyncpa [#allocation3], 1
    %s2358 = scalar_lea.sflag [#allocation3], 1
    %2359 = vsyncpa %s2358, 1

</llo_original>
